<compile_context>
chip_gen: v7x
topology: tpu7x:2x2x1
jax: 0.10.0
libtpu: 0.0.40
codegen_flags: <defaults>
</compile_context>

<pallas_src>
import functools

import jax
import jax.numpy as jnp
from jax.experimental import pallas as pl
from jax.experimental.pallas import tpu as pltpu


# ----------------------------- Pallas kernel ------------------------------ #

def _dilate_attn_kernel(q_ref, k_ref, v_ref, masks_ref, o_ref,
                        kpad_ref, vpad_ref, *,
                        scale, kernel_size, dilation, W, margin):
    """One grid step: G (batch*head) groups, spatially flattened.

    q_ref/k_ref/v_ref/o_ref : (G, hd, N)   with N = H*W (lane-dense minor dim)
    masks_ref               : (ks, N)      column-wrap masks (f32 {0,1})
    kpad_ref/vpad_ref       : (G, hd, N + 2*margin) VMEM scratch with zero halo
    """
    G, hd, N = q_ref.shape
    pad = dilation * (kernel_size - 1) // 2

    # ---- build the zero-haloed flat copies of k and v in VMEM -------------
    # (Re-initialized every step so the kernel is independent of grid order /
    #  which TensorCore runs the step.)
    zeros = jnp.zeros((G, hd, margin), kpad_ref.dtype)
    kpad_ref[:, :, pl.ds(0, margin)] = zeros
    kpad_ref[:, :, pl.ds(margin + N, margin)] = zeros
    vpad_ref[:, :, pl.ds(0, margin)] = zeros
    vpad_ref[:, :, pl.ds(margin + N, margin)] = zeros
    kpad_ref[:, :, pl.ds(margin, N)] = k_ref[...]
    vpad_ref[:, :, pl.ds(margin, N)] = v_ref[...]

    # Fold qk_scale into q once.
    q = q_ref[...].astype(jnp.float32) * scale                   # (G, hd, N)

    # Per-column-offset wrap masks (hoisted out of the tap loops).
    col_masks = [masks_ref[pl.ds(j, 1), :] for j in range(kernel_size)]  # (1,N)

    # Flattened shift of each tap.  Row-out-of-range taps read zeros from the
    # halo (matching Unfold's zero padding); column wrap is handled by masks.
    taps = [((i * dilation - pad) * W + (j * dilation - pad), j)
            for i in range(kernel_size) for j in range(kernel_size)]

    # ---- pass 1: per-tap logits + running max (stable softmax) ------------
    logits = []
    m = None
    for off, j in taps:
        k_tap = kpad_ref[:, :, pl.ds(margin + off, N)].astype(jnp.float32)
        l = jnp.sum(q * k_tap, axis=1) * col_masks[j]             # (G, N)
        logits.append(l)
        m = l if m is None else jnp.maximum(m, l)

    # ---- pass 2: fused exp / denominator / weighted-v accumulation --------
    denom = None
    out = None
    for (off, j), l in zip(taps, logits):
        e = jnp.exp(l - m)                                        # (G, N)
        denom = e if denom is None else denom + e
        v_tap = vpad_ref[:, :, pl.ds(margin + off, N)].astype(jnp.float32)
        w = (e * col_masks[j])[:, None, :]                        # (G, 1, N)
        out = w * v_tap if out is None else out + w * v_tap

    # Exact normalization (one divide per (G, N) plane; attn_drop p=0 -> id).
    inv = 1.0 / denom
    o_ref[...] = (out * inv[:, None, :]).astype(o_ref.dtype)


# ------------------------------- JAX glue ---------------------------------- #

def _round_up(x, m):
    return (x + m - 1) // m * m


def _pick_group(num_bh, head_dim, n, n_pad, kk, itemsize, budget_bytes):
    """Largest divisor G of num_bh whose tile-rounded per-step VMEM footprint
    fits the budget; prefers an even number of grid steps (two v7x cores)."""
    sub = _round_up(head_dim, 8)
    lane = _round_up(n, 128)
    lane_pad = _round_up(n_pad, 128)

    def footprint(g):
        block = g * sub * lane * itemsize            # one tiled (G, hd, N) block
        scratch = 2 * g * sub * lane_pad * itemsize  # k/v halo scratch
        g8 = _round_up(g, 8)
        temps = 4 * (3 * g * sub * lane + (kk + 4) * g8 * lane)  # f32 live values
        return 2 * 4 * block + scratch + temps       # q/k/v/out double-buffered

    cands = [g for g in range(1, num_bh + 1)
             if num_bh % g == 0 and footprint(g) <= budget_bytes]
    if not cands:
        return 1
    even = [g for g in cands if num_bh // g >= 2 and (num_bh // g) % 2 == 0]
    return max(even) if even else max(cands)


def dilate_attention(q, k, v, head_dim, qk_scale=None, kernel_size=3, dilation=1):
    B, d, H, W = q.shape
    assert d % head_dim == 0
    h = d // head_dim
    BH = B * h
    N = H * W
    KK = kernel_size * kernel_size
    pad = dilation * (kernel_size - 1) // 2
    scale = float(qk_scale) if qk_scale is not None else float(head_dim) ** (-0.5)

    # Spatially-flattened, UNPADDED inputs (pure reshapes; no extra HBM pass).
    q_r = q.reshape(BH, head_dim, N)
    k_r = k.reshape(BH, head_dim, N)
    v_r = v.reshape(BH, head_dim, N)

    # Column-wrap masks: tap column offset dx = j*dilation - pad is valid for
    # pixel column x iff 0 <= x + dx < W.  (Row out-of-range taps read zeros
    # from the VMEM halo and need no mask.)
    cols = jnp.arange(W, dtype=jnp.int32)
    masks = jnp.stack(
        [jnp.tile(((cols + (j * dilation - pad)) >= 0)
                  & ((cols + (j * dilation - pad)) < W), H)
         for j in range(kernel_size)]).astype(jnp.float32)        # (ks, N)

    # Halo size: max |flattened tap shift|, rounded to a lane tile so the
    # scratch middle stays lane-aligned.
    offs = [(i * dilation - pad) * W + (j * dilation - pad)
            for i in range(kernel_size) for j in range(kernel_size)]
    margin = _round_up(max(1, max(offs), -min(offs)), 128)
    n_pad = N + 2 * margin

    # VMEM budget from the actual part (v5e/v6e: 128 MiB, v7x: 64 MiB).
    try:
        vmem_cap = int(pltpu.get_tpu_info().vmem_capacity_bytes)
    except Exception:
        vmem_cap = 64 * 1024 * 1024
    vmem_limit = min(max(32 * 1024 * 1024, vmem_cap // 2), 100 * 1024 * 1024)
    G = _pick_group(BH, head_dim, N, n_pad, KK, q.dtype.itemsize,
                    budget_bytes=vmem_limit // 2)
    grid = (BH // G,)

    kernel = functools.partial(
        _dilate_attn_kernel, scale=scale, kernel_size=kernel_size,
        dilation=dilation, W=W, margin=margin)

    out = pl.pallas_call(
        kernel,
        out_shape=jax.ShapeDtypeStruct((BH, head_dim, N), q.dtype),
        grid_spec=pltpu.PrefetchScalarGridSpec(
            num_scalar_prefetch=0,
            grid=grid,
            in_specs=[
                pl.BlockSpec((G, head_dim, N), lambda i: (i, 0, 0)),
                pl.BlockSpec((G, head_dim, N), lambda i: (i, 0, 0)),
                pl.BlockSpec((G, head_dim, N), lambda i: (i, 0, 0)),
                pl.BlockSpec((kernel_size, N), lambda i: (0, 0)),
            ],
            out_specs=pl.BlockSpec((G, head_dim, N), lambda i: (i, 0, 0)),
            scratch_shapes=[
                pltpu.VMEM((G, head_dim, n_pad), q.dtype),
                pltpu.VMEM((G, head_dim, n_pad), q.dtype),
            ],
        ),
        compiler_params=pltpu.CompilerParams(
            dimension_semantics=("parallel",),
            vmem_limit_bytes=int(vmem_limit),
        ),
    )(q_r, k_r, v_r, masks)

    # [B*h, hd, N] -> [B, H, W, d] (channel order = (head, head_dim)), as the
    # module requires.  A channels-first consumer could skip this transpose.
    out = out.reshape(B, h, head_dim, H, W)
    return jnp.transpose(out, (0, 3, 4, 1, 2)).reshape(B, H, W, d)


# ------------------------- pure-JAX reference ------------------------------ #

def _unfold_nchw(x, kernel_size, dilation):
    """torch.nn.Unfold(kernel_size, dilation, pad=dilation*(ks-1)//2, stride=1)."""
    B, C, H, W = x.shape
    pad = dilation * (kernel_size - 1) // 2
    xp = jnp.pad(x, ((0, 0), (0, 0), (pad, pad), (pad, pad)))
    patches = []
    for i in range(kernel_size):
        for j in range(kernel_size):
            patches.append(xp[:, :, i * dilation:i * dilation + H,
                               j * dilation:j * dilation + W])
    return jnp.stack(patches, axis=2)


def dilate_attention_ref(q, k, v, head_dim, qk_scale=None, kernel_size=3, dilation=1):
    B, d, H, W = q.shape
    h = d // head_dim
    N = H * W
    KK = kernel_size * kernel_size
    scale = qk_scale if qk_scale is not None else head_dim ** (-0.5)

    qq = q.reshape(B, h, head_dim, 1, N).transpose(0, 1, 4, 3, 2)            # [B,h,N,1,hd]
    ku = _unfold_nchw(k, kernel_size, dilation).reshape(
        B, h, head_dim, KK, N).transpose(0, 1, 4, 2, 3)                      # [B,h,N,hd,KK]
    attn = jnp.matmul(qq, ku) * scale                                        # [B,h,N,1,KK]
    attn = jax.nn.softmax(attn, axis=-1)
    vu = _unfold_nchw(v, kernel_size, dilation).reshape(
        B, h, head_dim, KK, N).transpose(0, 1, 4, 3, 2)                      # [B,h,N,KK,hd]
    x = jnp.matmul(attn, vu)                                                 # [B,h,N,1,hd]
    x = x.transpose(0, 2, 1, 3, 4).reshape(B, H, W, d)
    return x


# --------------------------------- main ------------------------------------ #

if __name__ == "__main__":
    B, d, H, W = 2, 8, 16, 16
    head_dim = 4           # heads = d // head_dim = 2
    kernel_size, dilation = 3, 1

    key = jax.random.PRNGKey(0)
    kq, kk, kv = jax.random.split(key, 3)
    q = jax.random.normal(kq, (B, d, H, W), dtype=jnp.float32)
    k = jax.random.normal(kk, (B, d, H, W), dtype=jnp.float32)
    v = jax.random.normal(kv, (B, d, H, W), dtype=jnp.float32)

    out = dilate_attention(q, k, v, head_dim,
                           kernel_size=kernel_size, dilation=dilation)
    out = jax.block_until_ready(out)

    ref = dilate_attention_ref(q, k, v, head_dim,
                               kernel_size=kernel_size, dilation=dilation)
    ref = jax.block_until_ready(ref)

    assert out.shape == (B, H, W, d), out.shape
    assert jnp.allclose(out, ref, rtol=1e-4, atol=1e-4), (
        float(jnp.max(jnp.abs(out - ref))))

    print("KERNEL_OK")
</pallas_src>

<mosaic_0001>
module attributes {stable_mosaic.version = 11 : i64} {
  func.func @_dilate_attn_kernel(%arg0: i32, %arg1: memref<2x4x256xf32, #tpu.memory_space<vmem>>, %arg2: memref<2x4x256xf32, #tpu.memory_space<vmem>>, %arg3: memref<2x4x256xf32, #tpu.memory_space<vmem>>, %arg4: memref<3x256xf32, #tpu.memory_space<vmem>>, %arg5: memref<2x4x256xf32, #tpu.memory_space<vmem>>, %arg6: memref<2x4x512xf32, #tpu.memory_space<vmem>>, %arg7: memref<2x4x512xf32, #tpu.memory_space<vmem>>) attributes {dimension_semantics = [#tpu.dimension_semantics<parallel>], iteration_bounds = array<i64: 2>, scalar_prefetch = 0 : i64, scratch_operands = 2 : i64, tpu.core_type = #tpu.core_type<tc>, window_params = [{transform_indices = @transform_0, window_bounds = array<i64: 2, 4, 256>}, {transform_indices = @transform_1, window_bounds = array<i64: 2, 4, 256>}, {transform_indices = @transform_2, window_bounds = array<i64: 2, 4, 256>}, {pipeline_mode = #tpu.pipeline_mode<synchronous>, transform_indices = @transform_3, window_bounds = array<i64: 3, 256>}, {transform_indices = @transform_4, window_bounds = array<i64: 2, 4, 256>}]} {
    %cst = arith.constant 0.000000e+00 : f32
    %0 = vector.broadcast %cst : f32 to vector<2x4x128xf32>
    %c0 = arith.constant 0 : index
    %c0_0 = arith.constant 0 : index
    %c0_1 = arith.constant 0 : index
    %1 = vector.load %arg6[%c0, %c0_0, %c0_1] : memref<2x4x512xf32, #tpu.memory_space<vmem>>, vector<2x4x128xf32>
    tpu.vector_store %arg6[%c0, %c0_0, %c0_1], %0 {strides = array<i32>} : memref<2x4x512xf32, #tpu.memory_space<vmem>>, vector<2x4x128xf32>,
    %c0_2 = arith.constant 0 : index
    %c0_3 = arith.constant 0 : index
    %c384 = arith.constant 384 : index
    %2 = vector.load %arg6[%c0_2, %c0_3, %c384] : memref<2x4x512xf32, #tpu.memory_space<vmem>>, vector<2x4x128xf32>
    tpu.vector_store %arg6[%c0_2, %c0_3, %c384], %0 {strides = array<i32>} : memref<2x4x512xf32, #tpu.memory_space<vmem>>, vector<2x4x128xf32>,
    %c0_4 = arith.constant 0 : index
    %c0_5 = arith.constant 0 : index
    %c0_6 = arith.constant 0 : index
    %3 = vector.load %arg7[%c0_4, %c0_5, %c0_6] : memref<2x4x512xf32, #tpu.memory_space<vmem>>, vector<2x4x128xf32>
    tpu.vector_store %arg7[%c0_4, %c0_5, %c0_6], %0 {strides = array<i32>} : memref<2x4x512xf32, #tpu.memory_space<vmem>>, vector<2x4x128xf32>,
    %c0_7 = arith.constant 0 : index
    %c0_8 = arith.constant 0 : index
    %c384_9 = arith.constant 384 : index
    %4 = vector.load %arg7[%c0_7, %c0_8, %c384_9] : memref<2x4x512xf32, #tpu.memory_space<vmem>>, vector<2x4x128xf32>
    tpu.vector_store %arg7[%c0_7, %c0_8, %c384_9], %0 {strides = array<i32>} : memref<2x4x512xf32, #tpu.memory_space<vmem>>, vector<2x4x128xf32>,
    %c0_10 = arith.constant 0 : index
    %c0_11 = arith.constant 0 : index
    %c0_12 = arith.constant 0 : index
    %5 = vector.load %arg2[%c0_10, %c0_11, %c0_12] : memref<2x4x256xf32, #tpu.memory_space<vmem>>, vector<2x4x256xf32>
    %c0_13 = arith.constant 0 : index
    %c0_14 = arith.constant 0 : index
    %c128 = arith.constant 128 : index
    %6 = vector.load %arg6[%c0_13, %c0_14, %c128] : memref<2x4x512xf32, #tpu.memory_space<vmem>>, vector<2x4x256xf32>
    tpu.vector_store %arg6[%c0_13, %c0_14, %c128], %5 {strides = array<i32>} : memref<2x4x512xf32, #tpu.memory_space<vmem>>, vector<2x4x256xf32>,
    %c0_15 = arith.constant 0 : index
    %c0_16 = arith.constant 0 : index
    %c0_17 = arith.constant 0 : index
    %7 = vector.load %arg3[%c0_15, %c0_16, %c0_17] : memref<2x4x256xf32, #tpu.memory_space<vmem>>, vector<2x4x256xf32>
    %c0_18 = arith.constant 0 : index
    %c0_19 = arith.constant 0 : index
    %c128_20 = arith.constant 128 : index
    %8 = vector.load %arg7[%c0_18, %c0_19, %c128_20] : memref<2x4x512xf32, #tpu.memory_space<vmem>>, vector<2x4x256xf32>
    tpu.vector_store %arg7[%c0_18, %c0_19, %c128_20], %7 {strides = array<i32>} : memref<2x4x512xf32, #tpu.memory_space<vmem>>, vector<2x4x256xf32>,
    %c0_21 = arith.constant 0 : index
    %c0_22 = arith.constant 0 : index
    %c0_23 = arith.constant 0 : index
    %9 = vector.load %arg1[%c0_21, %c0_22, %c0_23] : memref<2x4x256xf32, #tpu.memory_space<vmem>>, vector<2x4x256xf32>
    %cst_24 = arith.constant 5.000000e-01 : f32
    %10 = vector.broadcast %cst_24 : f32 to vector<2x4x256xf32>
    %11 = arith.mulf %9, %10 : vector<2x4x256xf32>
    %c0_25 = arith.constant 0 : index
    %c0_26 = arith.constant 0 : index
    %12 = vector.load %arg4[%c0_25, %c0_26] : memref<3x256xf32, #tpu.memory_space<vmem>>, vector<1x256xf32>
    %c1 = arith.constant 1 : index
    %c0_27 = arith.constant 0 : index
    %13 = vector.load %arg4[%c1, %c0_27] : memref<3x256xf32, #tpu.memory_space<vmem>>, vector<1x256xf32>
    %c2 = arith.constant 2 : index
    %c0_28 = arith.constant 0 : index
    %14 = vector.load %arg4[%c2, %c0_28] : memref<3x256xf32, #tpu.memory_space<vmem>>, vector<1x256xf32>
    %c0_29 = arith.constant 0 : index
    %c0_30 = arith.constant 0 : index
    %c111 = arith.constant 111 : index
    %15 = vector.load %arg6[%c0_29, %c0_30, %c111] : memref<2x4x512xf32, #tpu.memory_space<vmem>>, vector<2x4x256xf32>
    %16 = arith.mulf %11, %15 : vector<2x4x256xf32>
    %cst_31 = arith.constant dense<0.000000e+00> : vector<2x256xf32>
    %17 = vector.multi_reduction <add>, %16, %cst_31 [1] : vector<2x4x256xf32> to vector<2x256xf32>
    %18 = vector.broadcast %12 : vector<1x256xf32> to vector<2x256xf32>
    %19 = arith.mulf %17, %18 : vector<2x256xf32>
    %c0_32 = arith.constant 0 : index
    %c0_33 = arith.constant 0 : index
    %c112 = arith.constant 112 : index
    %20 = vector.load %arg6[%c0_32, %c0_33, %c112] : memref<2x4x512xf32, #tpu.memory_space<vmem>>, vector<2x4x256xf32>
    %21 = arith.mulf %11, %20 : vector<2x4x256xf32>
    %cst_34 = arith.constant dense<0.000000e+00> : vector<2x256xf32>
    %22 = vector.multi_reduction <add>, %21, %cst_34 [1] : vector<2x4x256xf32> to vector<2x256xf32>
    %23 = vector.broadcast %13 : vector<1x256xf32> to vector<2x256xf32>
    %24 = arith.mulf %22, %23 : vector<2x256xf32>
    %25 = arith.maximumf %19, %24 : vector<2x256xf32>
    %c0_35 = arith.constant 0 : index
    %c0_36 = arith.constant 0 : index
    %c113 = arith.constant 113 : index
    %26 = vector.load %arg6[%c0_35, %c0_36, %c113] : memref<2x4x512xf32, #tpu.memory_space<vmem>>, vector<2x4x256xf32>
    %27 = arith.mulf %11, %26 : vector<2x4x256xf32>
    %cst_37 = arith.constant dense<0.000000e+00> : vector<2x256xf32>
    %28 = vector.multi_reduction <add>, %27, %cst_37 [1] : vector<2x4x256xf32> to vector<2x256xf32>
    %29 = vector.broadcast %14 : vector<1x256xf32> to vector<2x256xf32>
    %30 = arith.mulf %28, %29 : vector<2x256xf32>
    %31 = arith.maximumf %25, %30 : vector<2x256xf32>
    %c0_38 = arith.constant 0 : index
    %c0_39 = arith.constant 0 : index
    %c127 = arith.constant 127 : index
    %32 = vector.load %arg6[%c0_38, %c0_39, %c127] : memref<2x4x512xf32, #tpu.memory_space<vmem>>, vector<2x4x256xf32>
    %33 = arith.mulf %11, %32 : vector<2x4x256xf32>
    %cst_40 = arith.constant dense<0.000000e+00> : vector<2x256xf32>
    %34 = vector.multi_reduction <add>, %33, %cst_40 [1] : vector<2x4x256xf32> to vector<2x256xf32>
    %35 = vector.broadcast %12 : vector<1x256xf32> to vector<2x256xf32>
    %36 = arith.mulf %34, %35 : vector<2x256xf32>
    %37 = arith.maximumf %31, %36 : vector<2x256xf32>
    %c0_41 = arith.constant 0 : index
    %c0_42 = arith.constant 0 : index
    %c128_43 = arith.constant 128 : index
    %38 = vector.load %arg6[%c0_41, %c0_42, %c128_43] : memref<2x4x512xf32, #tpu.memory_space<vmem>>, vector<2x4x256xf32>
    %39 = arith.mulf %11, %38 : vector<2x4x256xf32>
    %cst_44 = arith.constant dense<0.000000e+00> : vector<2x256xf32>
    %40 = vector.multi_reduction <add>, %39, %cst_44 [1] : vector<2x4x256xf32> to vector<2x256xf32>
    %41 = vector.broadcast %13 : vector<1x256xf32> to vector<2x256xf32>
    %42 = arith.mulf %40, %41 : vector<2x256xf32>
    %43 = arith.maximumf %37, %42 : vector<2x256xf32>
    %c0_45 = arith.constant 0 : index
    %c0_46 = arith.constant 0 : index
    %c129 = arith.constant 129 : index
    %44 = vector.load %arg6[%c0_45, %c0_46, %c129] : memref<2x4x512xf32, #tpu.memory_space<vmem>>, vector<2x4x256xf32>
    %45 = arith.mulf %11, %44 : vector<2x4x256xf32>
    %cst_47 = arith.constant dense<0.000000e+00> : vector<2x256xf32>
    %46 = vector.multi_reduction <add>, %45, %cst_47 [1] : vector<2x4x256xf32> to vector<2x256xf32>
    %47 = vector.broadcast %14 : vector<1x256xf32> to vector<2x256xf32>
    %48 = arith.mulf %46, %47 : vector<2x256xf32>
    %49 = arith.maximumf %43, %48 : vector<2x256xf32>
    %c0_48 = arith.constant 0 : index
    %c0_49 = arith.constant 0 : index
    %c143 = arith.constant 143 : index
    %50 = vector.load %arg6[%c0_48, %c0_49, %c143] : memref<2x4x512xf32, #tpu.memory_space<vmem>>, vector<2x4x256xf32>
    %51 = arith.mulf %11, %50 : vector<2x4x256xf32>
    %cst_50 = arith.constant dense<0.000000e+00> : vector<2x256xf32>
    %52 = vector.multi_reduction <add>, %51, %cst_50 [1] : vector<2x4x256xf32> to vector<2x256xf32>
    %53 = vector.broadcast %12 : vector<1x256xf32> to vector<2x256xf32>
    %54 = arith.mulf %52, %53 : vector<2x256xf32>
    %55 = arith.maximumf %49, %54 : vector<2x256xf32>
    %c0_51 = arith.constant 0 : index
    %c0_52 = arith.constant 0 : index
    %c144 = arith.constant 144 : index
    %56 = vector.load %arg6[%c0_51, %c0_52, %c144] : memref<2x4x512xf32, #tpu.memory_space<vmem>>, vector<2x4x256xf32>
    %57 = arith.mulf %11, %56 : vector<2x4x256xf32>
    %cst_53 = arith.constant dense<0.000000e+00> : vector<2x256xf32>
    %58 = vector.multi_reduction <add>, %57, %cst_53 [1] : vector<2x4x256xf32> to vector<2x256xf32>
    %59 = vector.broadcast %13 : vector<1x256xf32> to vector<2x256xf32>
    %60 = arith.mulf %58, %59 : vector<2x256xf32>
    %61 = arith.maximumf %55, %60 : vector<2x256xf32>
    %c0_54 = arith.constant 0 : index
    %c0_55 = arith.constant 0 : index
    %c145 = arith.constant 145 : index
    %62 = vector.load %arg6[%c0_54, %c0_55, %c145] : memref<2x4x512xf32, #tpu.memory_space<vmem>>, vector<2x4x256xf32>
    %63 = arith.mulf %11, %62 : vector<2x4x256xf32>
    %cst_56 = arith.constant dense<0.000000e+00> : vector<2x256xf32>
    %64 = vector.multi_reduction <add>, %63, %cst_56 [1] : vector<2x4x256xf32> to vector<2x256xf32>
    %65 = vector.broadcast %14 : vector<1x256xf32> to vector<2x256xf32>
    %66 = arith.mulf %64, %65 : vector<2x256xf32>
    %67 = arith.maximumf %61, %66 : vector<2x256xf32>
    %68 = arith.subf %19, %67 : vector<2x256xf32>
    %69 = math.exp %68 : vector<2x256xf32>
    %c0_57 = arith.constant 0 : index
    %c0_58 = arith.constant 0 : index
    %c111_59 = arith.constant 111 : index
    %70 = vector.load %arg7[%c0_57, %c0_58, %c111_59] : memref<2x4x512xf32, #tpu.memory_space<vmem>>, vector<2x4x256xf32>
    %71 = vector.broadcast %12 : vector<1x256xf32> to vector<2x256xf32>
    %72 = arith.mulf %69, %71 : vector<2x256xf32>
    %73 = vector.shape_cast %72 : vector<2x256xf32> to vector<2x1x256xf32>
    %74 = vector.broadcast %73 : vector<2x1x256xf32> to vector<2x4x256xf32>
    %75 = arith.mulf %74, %70 : vector<2x4x256xf32>
    %76 = arith.subf %24, %67 : vector<2x256xf32>
    %77 = math.exp %76 : vector<2x256xf32>
    %78 = arith.addf %69, %77 : vector<2x256xf32>
    %c0_60 = arith.constant 0 : index
    %c0_61 = arith.constant 0 : index
    %c112_62 = arith.constant 112 : index
    %79 = vector.load %arg7[%c0_60, %c0_61, %c112_62] : memref<2x4x512xf32, #tpu.memory_space<vmem>>, vector<2x4x256xf32>
    %80 = vector.broadcast %13 : vector<1x256xf32> to vector<2x256xf32>
    %81 = arith.mulf %77, %80 : vector<2x256xf32>
    %82 = vector.shape_cast %81 : vector<2x256xf32> to vector<2x1x256xf32>
    %83 = vector.broadcast %82 : vector<2x1x256xf32> to vector<2x4x256xf32>
    %84 = arith.mulf %83, %79 : vector<2x4x256xf32>
    %85 = arith.addf %75, %84 : vector<2x4x256xf32>
    %86 = arith.subf %30, %67 : vector<2x256xf32>
    %87 = math.exp %86 : vector<2x256xf32>
    %88 = arith.addf %78, %87 : vector<2x256xf32>
    %c0_63 = arith.constant 0 : index
    %c0_64 = arith.constant 0 : index
    %c113_65 = arith.constant 113 : index
    %89 = vector.load %arg7[%c0_63, %c0_64, %c113_65] : memref<2x4x512xf32, #tpu.memory_space<vmem>>, vector<2x4x256xf32>
    %90 = vector.broadcast %14 : vector<1x256xf32> to vector<2x256xf32>
    %91 = arith.mulf %87, %90 : vector<2x256xf32>
    %92 = vector.shape_cast %91 : vector<2x256xf32> to vector<2x1x256xf32>
    %93 = vector.broadcast %92 : vector<2x1x256xf32> to vector<2x4x256xf32>
    %94 = arith.mulf %93, %89 : vector<2x4x256xf32>
    %95 = arith.addf %85, %94 : vector<2x4x256xf32>
    %96 = arith.subf %36, %67 : vector<2x256xf32>
    %97 = math.exp %96 : vector<2x256xf32>
    %98 = arith.addf %88, %97 : vector<2x256xf32>
    %c0_66 = arith.constant 0 : index
    %c0_67 = arith.constant 0 : index
    %c127_68 = arith.constant 127 : index
    %99 = vector.load %arg7[%c0_66, %c0_67, %c127_68] : memref<2x4x512xf32, #tpu.memory_space<vmem>>, vector<2x4x256xf32>
    %100 = vector.broadcast %12 : vector<1x256xf32> to vector<2x256xf32>
    %101 = arith.mulf %97, %100 : vector<2x256xf32>
    %102 = vector.shape_cast %101 : vector<2x256xf32> to vector<2x1x256xf32>
    %103 = vector.broadcast %102 : vector<2x1x256xf32> to vector<2x4x256xf32>
    %104 = arith.mulf %103, %99 : vector<2x4x256xf32>
    %105 = arith.addf %95, %104 : vector<2x4x256xf32>
    %106 = arith.subf %42, %67 : vector<2x256xf32>
    %107 = math.exp %106 : vector<2x256xf32>
    %108 = arith.addf %98, %107 : vector<2x256xf32>
    %c0_69 = arith.constant 0 : index
    %c0_70 = arith.constant 0 : index
    %c128_71 = arith.constant 128 : index
    %109 = vector.load %arg7[%c0_69, %c0_70, %c128_71] : memref<2x4x512xf32, #tpu.memory_space<vmem>>, vector<2x4x256xf32>
    %110 = vector.broadcast %13 : vector<1x256xf32> to vector<2x256xf32>
    %111 = arith.mulf %107, %110 : vector<2x256xf32>
    %112 = vector.shape_cast %111 : vector<2x256xf32> to vector<2x1x256xf32>
    %113 = vector.broadcast %112 : vector<2x1x256xf32> to vector<2x4x256xf32>
    %114 = arith.mulf %113, %109 : vector<2x4x256xf32>
    %115 = arith.addf %105, %114 : vector<2x4x256xf32>
    %116 = arith.subf %48, %67 : vector<2x256xf32>
    %117 = math.exp %116 : vector<2x256xf32>
    %118 = arith.addf %108, %117 : vector<2x256xf32>
    %c0_72 = arith.constant 0 : index
    %c0_73 = arith.constant 0 : index
    %c129_74 = arith.constant 129 : index
    %119 = vector.load %arg7[%c0_72, %c0_73, %c129_74] : memref<2x4x512xf32, #tpu.memory_space<vmem>>, vector<2x4x256xf32>
    %120 = vector.broadcast %14 : vector<1x256xf32> to vector<2x256xf32>
    %121 = arith.mulf %117, %120 : vector<2x256xf32>
    %122 = vector.shape_cast %121 : vector<2x256xf32> to vector<2x1x256xf32>
    %123 = vector.broadcast %122 : vector<2x1x256xf32> to vector<2x4x256xf32>
    %124 = arith.mulf %123, %119 : vector<2x4x256xf32>
    %125 = arith.addf %115, %124 : vector<2x4x256xf32>
    %126 = arith.subf %54, %67 : vector<2x256xf32>
    %127 = math.exp %126 : vector<2x256xf32>
    %128 = arith.addf %118, %127 : vector<2x256xf32>
    %c0_75 = arith.constant 0 : index
    %c0_76 = arith.constant 0 : index
    %c143_77 = arith.constant 143 : index
    %129 = vector.load %arg7[%c0_75, %c0_76, %c143_77] : memref<2x4x512xf32, #tpu.memory_space<vmem>>, vector<2x4x256xf32>
    %130 = vector.broadcast %12 : vector<1x256xf32> to vector<2x256xf32>
    %131 = arith.mulf %127, %130 : vector<2x256xf32>
    %132 = vector.shape_cast %131 : vector<2x256xf32> to vector<2x1x256xf32>
    %133 = vector.broadcast %132 : vector<2x1x256xf32> to vector<2x4x256xf32>
    %134 = arith.mulf %133, %129 : vector<2x4x256xf32>
    %135 = arith.addf %125, %134 : vector<2x4x256xf32>
    %136 = arith.subf %60, %67 : vector<2x256xf32>
    %137 = math.exp %136 : vector<2x256xf32>
    %138 = arith.addf %128, %137 : vector<2x256xf32>
    %c0_78 = arith.constant 0 : index
    %c0_79 = arith.constant 0 : index
    %c144_80 = arith.constant 144 : index
    %139 = vector.load %arg7[%c0_78, %c0_79, %c144_80] : memref<2x4x512xf32, #tpu.memory_space<vmem>>, vector<2x4x256xf32>
    %140 = vector.broadcast %13 : vector<1x256xf32> to vector<2x256xf32>
    %141 = arith.mulf %137, %140 : vector<2x256xf32>
    %142 = vector.shape_cast %141 : vector<2x256xf32> to vector<2x1x256xf32>
    %143 = vector.broadcast %142 : vector<2x1x256xf32> to vector<2x4x256xf32>
    %144 = arith.mulf %143, %139 : vector<2x4x256xf32>
    %145 = arith.addf %135, %144 : vector<2x4x256xf32>
    %146 = arith.subf %66, %67 : vector<2x256xf32>
    %147 = math.exp %146 : vector<2x256xf32>
    %148 = arith.addf %138, %147 : vector<2x256xf32>
    %c0_81 = arith.constant 0 : index
    %c0_82 = arith.constant 0 : index
    %c145_83 = arith.constant 145 : index
    %149 = vector.load %arg7[%c0_81, %c0_82, %c145_83] : memref<2x4x512xf32, #tpu.memory_space<vmem>>, vector<2x4x256xf32>
    %150 = vector.broadcast %14 : vector<1x256xf32> to vector<2x256xf32>
    %151 = arith.mulf %147, %150 : vector<2x256xf32>
    %152 = vector.shape_cast %151 : vector<2x256xf32> to vector<2x1x256xf32>
    %153 = vector.broadcast %152 : vector<2x1x256xf32> to vector<2x4x256xf32>
    %154 = arith.mulf %153, %149 : vector<2x4x256xf32>
    %155 = arith.addf %145, %154 : vector<2x4x256xf32>
    %cst_84 = arith.constant 1.000000e+00 : f32
    %156 = vector.broadcast %cst_84 : f32 to vector<2x256xf32>
    %157 = arith.divf %156, %148 : vector<2x256xf32>
    %158 = vector.shape_cast %157 : vector<2x256xf32> to vector<2x1x256xf32>
    %159 = vector.broadcast %158 : vector<2x1x256xf32> to vector<2x4x256xf32>
    %160 = arith.mulf %155, %159 : vector<2x4x256xf32>
    %c0_85 = arith.constant 0 : index
    %c0_86 = arith.constant 0 : index
    %c0_87 = arith.constant 0 : index
    %161 = vector.load %arg5[%c0_85, %c0_86, %c0_87] : memref<2x4x256xf32, #tpu.memory_space<vmem>>, vector<2x4x256xf32>
    tpu.vector_store %arg5[%c0_85, %c0_86, %c0_87], %160 {strides = array<i32>} : memref<2x4x256xf32, #tpu.memory_space<vmem>>, vector<2x4x256xf32>,
    return
  }
  func.func @transform_0(%arg0: i32) -> (i32, i32, i32) {
    %c0_i32 = arith.constant 0 : i32
    %c0_i32_0 = arith.constant 0 : i32
    %c0_i32_1 = arith.constant 0 : i32
    return %arg0, %c0_i32, %c0_i32_0 : i32, i32, i32
  }
  func.func @transform_1(%arg0: i32) -> (i32, i32, i32) {
    %c0_i32 = arith.constant 0 : i32
    %c0_i32_0 = arith.constant 0 : i32
    %c0_i32_1 = arith.constant 0 : i32
    return %arg0, %c0_i32, %c0_i32_0 : i32, i32, i32
  }
  func.func @transform_2(%arg0: i32) -> (i32, i32, i32) {
    %c0_i32 = arith.constant 0 : i32
    %c0_i32_0 = arith.constant 0 : i32
    %c0_i32_1 = arith.constant 0 : i32
    return %arg0, %c0_i32, %c0_i32_0 : i32, i32, i32
  }
  func.func @transform_3(%arg0: i32) -> (i32, i32) {
    %c0_i32 = arith.constant 0 : i32
    %c0_i32_0 = arith.constant 0 : i32
    %c0_i32_1 = arith.constant 0 : i32
    return %c0_i32, %c0_i32_0 : i32, i32
  }
  func.func @transform_4(%arg0: i32) -> (i32, i32, i32) {
    %c0_i32 = arith.constant 0 : i32
    %c0_i32_0 = arith.constant 0 : i32
    %c0_i32_1 = arith.constant 0 : i32
    return %arg0, %c0_i32, %c0_i32_0 : i32, i32, i32
  }
}

</mosaic_0001>

<llo_original>
// kernel: tpu_custom_call.1
$region0: #{tpu_custom_call.1}
  #allocation0 [shape = 'u32[]', space=smem, size = 0x4, offset = 0x4, fixed_abs, tag = 'smem constant byte address 0x4 - core index']
  #allocation1 [shape = 'u32[144,128]{1,0:T(1,128)}', space=vmem, size = 0x12000, scoped, tag = 'internal scratch']
  #allocation2 [shape = 'f32[2,4,512]{2,1,0:T(4,128)}', space=vmem, size = 0x4000, scoped, tag = 'scratch operand']
  #allocation3 [shape = 'f32[2,4,512]{2,1,0:T(4,128)}', space=vmem, size = 0x4000, scoped, tag = 'scratch operand']
  %s0 = inlined_call_operand.hbm [shape: f32[4,4,256], index: 0, kind: input, shape index: {}]
  %s1 = inlined_call_operand.hbm [shape: f32[4,4,256], index: 1, kind: input, shape index: {}]
  %s2 = inlined_call_operand.hbm [shape: f32[4,4,256], index: 2, kind: input, shape index: {}]
  %s3 = inlined_call_operand.vmem [shape: f32[3,256], index: 3, kind: input, shape index: {}]
  %s4 = inlined_call_operand.hbm [shape: f32[4,4,256], index: 4, kind: output, shape index: {}]
  %s5 = sld [smem:[#allocation0]]
  $region61: #{tpu_custom_call.1} parent=0
    _
  %s7 = ssub.s32 1, %s5
  %s8 = scalar_select 0, %s7, %s5
  $region1: #{tpu_custom_call.1} parent=0
    #allocation4 [shape = 'u8[16384]{0}', space=vmem, size = 0x4000, scoped, tag = 'input window, operand 0']
    #allocation5 [shape = 's32[2]{0}', space=sflag, size = 0x8, scoped, tag = 'scoped memory for tpu_custom_call.1']
    #allocation6 [shape = 's32[2]{0}', space=sflag, size = 0x8, scoped, tag = 'scoped memory for tpu_custom_call.1']
    #allocation7 [shape = 'u8[16384]{0}', space=vmem, size = 0x4000, scoped, tag = 'input window, operand 1']
    #allocation8 [shape = 's32[2]{0}', space=sflag, size = 0x8, scoped, tag = 'scoped memory for tpu_custom_call.1']
    #allocation9 [shape = 'u8[16384]{0}', space=vmem, size = 0x4000, scoped, tag = 'input window, operand 2']
    #allocation10 [shape = 'u8[16384]{0}', space=vmem, size = 0x4000, scoped, tag = 'output window, operand 0']
    %9 = vsyncpa [#allocation5], 0
    %s10 = scalar_lea.sflag [#allocation5], 1
    %11 = vsyncpa %s10, 0
    %12 = vsyncpa [#allocation8], 0
    %s13 = scalar_lea.sflag [#allocation8], 1
    %14 = vsyncpa %s13, 0
    %15 = vsyncpa [#allocation6], 0
    %s16 = scalar_lea.sflag [#allocation6], 1
    %17 = vsyncpa %s16, 0
    loop: start=0, step=1, limit=4
    $region2: #{tpu_custom_call.1} parent=1 // loop_pre_header
      _
    $region3: #{tpu_custom_call.1} parent=1 // loop_header
      %s19 = sphi 0, %s23
      %p20 = scmp.ge.s32.totalorder %s19, 4
      %s29 = sphi 0, %s31
      %s32 = sphi 0, %s29
      %s33 = sphi 0, %s32
      %s49 = sphi 0, %s33
      %s55 = sphi 0, %s57
      %s58 = sphi 0, %s55
      %s59 = sphi 0, %s58
      %s75 = sphi 0, %s59
      %s81 = sphi 0, %s83
      %s84 = sphi 0, %s81
      %s85 = sphi 0, %s84
      %s101 = sphi 0, %s85
      %s105 = sphi 0, %s105
      %s107 = sphi 0, %s105
      %s108 = sphi 0, %s107
      %s122 = sphi 0, %s108
      %s128 = sphi 0, %s130
      %s131 = sphi 0, %s128
      %s132 = sphi 0, %s131
      %s148 = sphi 0, %s132
    $region4: #{tpu_custom_call.1} parent=1 // loop_header_branch
      %22 = sbr.rel (%p20) target = $region8
    $region5: #{tpu_custom_call.1} parent=1 // loop_body
      %s24 = ssub.s32 %s19, 1
      %s25 = ssub.s32 %s19, 2
      %s26 = sadd.s32 %s19, 1
      %s27 = ssub.s32 %s19, %s26
      %p28 = scmp.eq.s32.totalorder %s27, 0
      %s30 = sadd.s32 %s29, 1
      %s31 = scalar_select %p28, %s29, %s30
      %p34 = pneg %p28
      %p35 = scmp.eq.s32.totalorder %s19, 1
      %p36 = por %p34, %p35
      %p37 = scmp.ne.s32.totalorder %s29, %s32
      %p38 = scmp.eq.s32.totalorder %s19, 0
      %p39 = por %p37, %p38
      %p40 = scmp.ne.s32.totalorder %s29, %s32
      %p41 = scmp.eq.s32.totalorder %s24, 1
      %p42 = por %p40, %p41
      %p43 = scmp.ne.s32.totalorder %s32, %s33
      %p44 = scmp.eq.s32.totalorder %s24, 0
      %p45 = por %p43, %p44
      %p46 = scmp.ne.s32.totalorder %s32, %s33
      %p47 = scmp.eq.s32.totalorder %s25, 1
      %p48 = por %p46, %p47
      %p50 = scmp.ne.s32.totalorder %s33, %s49
      %p51 = scmp.eq.s32.totalorder %s25, 0
      %p52 = por %p50, %p51
      %s53 = ssub.s32 %s19, %s26
      %p54 = scmp.eq.s32.totalorder %s53, 0
      %s56 = sadd.s32 %s55, 1
      %s57 = scalar_select %p54, %s55, %s56
      %p60 = pneg %p54
      %p61 = scmp.eq.s32.totalorder %s19, 1
      %p62 = por %p60, %p61
      %p63 = scmp.ne.s32.totalorder %s55, %s58
      %p64 = scmp.eq.s32.totalorder %s19, 0
      %p65 = por %p63, %p64
      %p66 = scmp.ne.s32.totalorder %s55, %s58
      %p67 = scmp.eq.s32.totalorder %s24, 1
      %p68 = por %p66, %p67
      %p69 = scmp.ne.s32.totalorder %s58, %s59
      %p70 = scmp.eq.s32.totalorder %s24, 0
      %p71 = por %p69, %p70
      %p72 = scmp.ne.s32.totalorder %s58, %s59
      %p73 = scmp.eq.s32.totalorder %s25, 1
      %p74 = por %p72, %p73
      %p76 = scmp.ne.s32.totalorder %s59, %s75
      %p77 = scmp.eq.s32.totalorder %s25, 0
      %p78 = por %p76, %p77
      %s79 = ssub.s32 %s19, %s26
      %p80 = scmp.eq.s32.totalorder %s79, 0
      %s82 = sadd.s32 %s81, 1
      %s83 = scalar_select %p80, %s81, %s82
      %p86 = pneg %p80
      %p87 = scmp.eq.s32.totalorder %s19, 1
      %p88 = por %p86, %p87
      %p89 = scmp.ne.s32.totalorder %s81, %s84
      %p90 = scmp.eq.s32.totalorder %s19, 0
      %p91 = por %p89, %p90
      %p92 = scmp.ne.s32.totalorder %s81, %s84
      %p93 = scmp.eq.s32.totalorder %s24, 1
      %p94 = por %p92, %p93
      %p95 = scmp.ne.s32.totalorder %s84, %s85
      %p96 = scmp.eq.s32.totalorder %s24, 0
      %p97 = por %p95, %p96
      %p98 = scmp.ne.s32.totalorder %s84, %s85
      %p99 = scmp.eq.s32.totalorder %s25, 1
      %p100 = por %p98, %p99
      %p102 = scmp.ne.s32.totalorder %s85, %s101
      %p103 = scmp.eq.s32.totalorder %s25, 0
      %p104 = por %p102, %p103
      %s106 = sadd.s32 %s105, 1
      %p109 = scmp.eq.s32.totalorder %s19, 1
      %p110 = scmp.ne.s32.totalorder %s105, %s107
      %p111 = scmp.eq.s32.totalorder %s19, 0
      %p112 = por %p110, %p111
      %p113 = scmp.ne.s32.totalorder %s105, %s107
      %p114 = scmp.eq.s32.totalorder %s24, 1
      %p115 = por %p113, %p114
      %p116 = scmp.ne.s32.totalorder %s107, %s108
      %p117 = scmp.eq.s32.totalorder %s24, 0
      %p118 = por %p116, %p117
      %p119 = scmp.ne.s32.totalorder %s107, %s108
      %p120 = scmp.eq.s32.totalorder %s25, 1
      %p121 = por %p119, %p120
      %p123 = scmp.ne.s32.totalorder %s108, %s122
      %p124 = scmp.eq.s32.totalorder %s25, 0
      %p125 = por %p123, %p124
      %s126 = ssub.s32 %s19, %s26
      %p127 = scmp.eq.s32.totalorder %s126, 0
      %s129 = sadd.s32 %s128, 1
      %s130 = scalar_select %p127, %s128, %s129
      %p133 = pneg %p127
      %p134 = scmp.eq.s32.totalorder %s19, 1
      %p135 = por %p133, %p134
      %p136 = scmp.ne.s32.totalorder %s128, %s131
      %p137 = scmp.eq.s32.totalorder %s19, 0
      %p138 = por %p136, %p137
      %p139 = scmp.ne.s32.totalorder %s128, %s131
      %p140 = scmp.eq.s32.totalorder %s24, 1
      %p141 = por %p139, %p140
      %p142 = scmp.ne.s32.totalorder %s131, %s132
      %p143 = scmp.eq.s32.totalorder %s24, 0
      %p144 = por %p142, %p143
      %p145 = scmp.ne.s32.totalorder %s131, %s132
      %p146 = scmp.eq.s32.totalorder %s25, 1
      %p147 = por %p145, %p146
      %p149 = scmp.ne.s32.totalorder %s132, %s148
      %p150 = scmp.eq.s32.totalorder %s25, 0
      %p151 = por %p149, %p150
      %p152 = scmp.le.s32.totalorder 1, %s19
      %p153 = scmp.lt.s32.totalorder %s19, 3
      %p154 = pnand %p152, %p153
      %p155 = pneg %p154
      // Predicated region
      $region9: #{tpu_custom_call.1} parent=5 // pred_check
        _
      $region10: #{tpu_custom_call.1} parent=5 // pred_check_branch
        %157 = sbr.rel (%p154) target = $region12
      $region11: #{tpu_custom_call.1} parent=5 // pred_region
        %s158 = ssub.s32 %s19, 1
        // Predicated region
        $region13: #{tpu_custom_call.1} parent=11 // pred_check
          %p159 = pneg %p118
        $region14: #{tpu_custom_call.1} parent=11 // pred_check_branch
          %161 = sbr.rel (%p159) target = $region16
        $region15: #{tpu_custom_call.1} parent=11 // pred_region
          _
        $region16: #{tpu_custom_call.1} parent=11 // pred_fallthru
          _
      $region12: #{tpu_custom_call.1} parent=5 // pred_fallthru
        _
      %p162 = scmp.lt.s32.totalorder %s19, 2
      // Predicated region
      $region17: #{tpu_custom_call.1} parent=5 // pred_check
        %p163 = pneg %p162
      $region18: #{tpu_custom_call.1} parent=5 // pred_check_branch
        %165 = sbr.rel (%p163) target = $region20
      $region19: #{tpu_custom_call.1} parent=5 // pred_region
        // Predicated region
        $region21: #{tpu_custom_call.1} parent=19 // pred_check
          %p166 = pneg %p39
        $region22: #{tpu_custom_call.1} parent=19 // pred_check_branch
          %168 = sbr.rel (%p166) target = $region24
        $region23: #{tpu_custom_call.1} parent=19 // pred_region
          %s169 = sand.u32 %s29, 1
          %s170 = scalar_lea.sflag [#allocation5], %s169
          %s171 = sand.u32 %s29, 1
          %s172 = smul.addr %s171, 16
          %s173 = scalar_lea.vmem [#allocation4], %s172
          %s174 = smul.u32 2, %s19
          %s176 = ssub.s32 256, 256
          %177 = vsyncadd %s170, %s176
          %s178 = smul.addr %s174, 2
          %s179 = smul.addr %s178, 64
          %s180 = scalar_lea.hbm %s0, %s179
          %s181 = sshll.u32 %s173, 4
          %s182 = int_to_ptr.vmem [resolvable:$true] %s181
          %187 = dma.hbm_to_vmem [thread:$0]  %s180, 256, %s182, %s170, 128, 128, 8
        $region24: #{tpu_custom_call.1} parent=19 // pred_fallthru
          _
        // Predicated region
        $region25: #{tpu_custom_call.1} parent=19 // pred_check
          %p188 = pneg %p65
        $region26: #{tpu_custom_call.1} parent=19 // pred_check_branch
          %190 = sbr.rel (%p188) target = $region28
        $region27: #{tpu_custom_call.1} parent=19 // pred_region
          %s191 = sand.u32 %s19, 1
          %s192 = scalar_lea.sflag [#allocation8], %s191
          %s193 = sand.u32 %s55, 1
          %s194 = smul.addr %s193, 16
          %s195 = scalar_lea.vmem [#allocation7], %s194
          %s196 = smul.u32 2, %s19
          %s198 = ssub.s32 256, 256
          %199 = vsyncadd %s192, %s198
          %s200 = smul.addr %s196, 2
          %s201 = smul.addr %s200, 64
          %s202 = scalar_lea.hbm %s1, %s201
          %s203 = sshll.u32 %s195, 4
          %s204 = int_to_ptr.vmem [resolvable:$true] %s203
          %209 = dma.hbm_to_vmem [thread:$0]  %s202, 256, %s204, %s192, 128, 128, 8
        $region28: #{tpu_custom_call.1} parent=19 // pred_fallthru
          _
        // Predicated region
        $region29: #{tpu_custom_call.1} parent=19 // pred_check
          %p210 = pneg %p91
        $region30: #{tpu_custom_call.1} parent=19 // pred_check_branch
          %212 = sbr.rel (%p210) target = $region32
        $region31: #{tpu_custom_call.1} parent=19 // pred_region
          %s213 = sand.u32 %s19, 1
          %s214 = scalar_lea.sflag [#allocation8], %s213
          %s215 = sand.u32 %s81, 1
          %s216 = smul.addr %s215, 16
          %s217 = scalar_lea.vmem [#allocation9], %s216
          %s218 = smul.u32 2, %s19
          %s220 = ssub.s32 256, 256
          %221 = vsyncadd %s214, %s220
          %s222 = smul.addr %s218, 2
          %s223 = smul.addr %s222, 64
          %s224 = scalar_lea.hbm %s2, %s223
          %s225 = sshll.u32 %s217, 4
          %s226 = int_to_ptr.vmem [resolvable:$true] %s225
          %231 = dma.hbm_to_vmem [thread:$0]  %s224, 256, %s226, %s214, 128, 128, 8
        $region32: #{tpu_custom_call.1} parent=19 // pred_fallthru
          _
      $region20: #{tpu_custom_call.1} parent=5 // pred_fallthru
        _
      %p232 = scmp.le.s32.totalorder 1, %s19
      %p233 = scmp.lt.s32.totalorder %s19, 3
      %p234 = pnand %p232, %p233
      %p235 = pneg %p234
      // Predicated region
      $region33: #{tpu_custom_call.1} parent=5 // pred_check
        _
      $region34: #{tpu_custom_call.1} parent=5 // pred_check_branch
        %237 = sbr.rel (%p234) target = $region36
      $region35: #{tpu_custom_call.1} parent=5 // pred_region
        %s238 = ssub.s32 %s19, 1
        %s239 = sand.u32 %s32, 1
        %s240 = scalar_lea.sflag [#allocation5], %s239
        %s241 = sand.u32 %s32, 1
        %s242 = smul.addr %s241, 16
        %s243 = scalar_lea.vmem [#allocation4], %s242
        // Predicated region
        $region37: #{tpu_custom_call.1} parent=35 // pred_check
          %p244 = pneg %p45
        $region38: #{tpu_custom_call.1} parent=35 // pred_check_branch
          %246 = sbr.rel (%p244) target = $region40
        $region39: #{tpu_custom_call.1} parent=35 // pred_region
          %247 = dma.done %s240, 256
        $region40: #{tpu_custom_call.1} parent=35 // pred_fallthru
          _
        %s248 = sand.u32 %s24, 1
        %s249 = scalar_lea.sflag [#allocation8], %s248
        %s250 = sand.u32 %s58, 1
        %s251 = smul.addr %s250, 16
        %s252 = scalar_lea.vmem [#allocation7], %s251
        // Predicated region
        $region41: #{tpu_custom_call.1} parent=35 // pred_check
          %p253 = pneg %p71
        $region42: #{tpu_custom_call.1} parent=35 // pred_check_branch
          %255 = sbr.rel (%p253) target = $region44
        $region43: #{tpu_custom_call.1} parent=35 // pred_region
          %256 = dma.done %s249, 256
        $region44: #{tpu_custom_call.1} parent=35 // pred_fallthru
          _
        %s257 = sand.u32 %s24, 1
        %s258 = scalar_lea.sflag [#allocation8], %s257
        %s259 = sand.u32 %s84, 1
        %s260 = smul.addr %s259, 16
        %s261 = scalar_lea.vmem [#allocation9], %s260
        // Predicated region
        $region45: #{tpu_custom_call.1} parent=35 // pred_check
          %p262 = pneg %p97
        $region46: #{tpu_custom_call.1} parent=35 // pred_check_branch
          %264 = sbr.rel (%p262) target = $region48
        $region47: #{tpu_custom_call.1} parent=35 // pred_region
          %265 = dma.done %s258, 256
        $region48: #{tpu_custom_call.1} parent=35 // pred_fallthru
          _
        %s266 = sand.u32 %s32, 1
        %s267 = scalar_lea.sflag [#allocation5], %s266
        %s268 = sand.u32 %s32, 1
        %s269 = smul.addr %s268, 16
        %s270 = scalar_lea.vmem [#allocation4], %s269
        %p271 = pneg %p45
        %p272 = pneg %p42
        %s273 = sand.u32 %s24, 1
        %s274 = scalar_lea.sflag [#allocation8], %s273
        %s275 = sand.u32 %s58, 1
        %s276 = smul.addr %s275, 16
        %s277 = scalar_lea.vmem [#allocation7], %s276
        %p278 = pneg %p71
        %p279 = pneg %p68
        %s280 = sand.u32 %s24, 1
        %s281 = scalar_lea.sflag [#allocation8], %s280
        %s282 = sand.u32 %s84, 1
        %s283 = smul.addr %s282, 16
        %s284 = scalar_lea.vmem [#allocation9], %s283
        %p285 = pneg %p97
        %p286 = pneg %p94
        %p287 = pneg %p118
        %p288 = pneg %p115
        %p289 = pneg %p144
        %p290 = pneg %p141
        %s291 = sand.u32 %s131, 1
        %s292 = scalar_lea.sflag [#allocation6], %s291
        %s293 = sand.u32 %s131, 1
        %s294 = smul.addr %s293, 16
        %s295 = scalar_lea.vmem [#allocation10], %s294
        %s296 = smul.u32 2, %s24
        %s297 = smul.u32 2, %s24
        %s298 = smul.u32 2, %s24
        %s299 = smul.u32 2, %s24
        %300 = vst [vmem:[#allocation2] sm:$0xf] 0.0
        %301 = vst [vmem:[#allocation2 + $0x10] sm:$0xf] 0.0
        %302 = vst [vmem:[#allocation2 + $0xc] sm:$0xf] 0.0
        %303 = vst [vmem:[#allocation2 + $0x1c] sm:$0xf] 0.0
        %304 = vst [vmem:[#allocation3] sm:$0xf] 0.0
        %305 = vst [vmem:[#allocation3 + $0x10] sm:$0xf] 0.0
        %306 = vst [vmem:[#allocation3 + $0xc] sm:$0xf] 0.0
        %307 = vst [vmem:[#allocation3 + $0x1c] sm:$0xf] 0.0
        %v308 = vld [vmem:[%s252] sm:$0xff]
        %v309 = vld [vmem:[%s252 + $0x8] sm:$0xff]
        %310 = vst [vmem:[#allocation2 + $0x4] sm:$0xff] %v308
        %311 = vst [vmem:[#allocation2 + $0x14] sm:$0xff] %v309
        %v312 = vld [vmem:[%s261] sm:$0xff]
        %v313 = vld [vmem:[%s261 + $0x8] sm:$0xff]
        %314 = vst [vmem:[#allocation3 + $0x4] sm:$0xff] %v312
        %315 = vst [vmem:[#allocation3 + $0x14] sm:$0xff] %v313
        %v316 = vld [vmem:[%s243] sm:$0xff]
        %v317 = vld [vmem:[%s243 + $0x8] sm:$0xff]
        %v318 = vmul.f32 %v316, 0.5
        %v319 = vmul.f32 %v317, 0.5
        %v320 = vld [vmem:[%s3] ss:$4 sm:$0x3]
        %s321 = scalar_lea.vmem %s3, 1
        %v322 = vld [vmem:[%s321] ss:$4 sm:$0x3]
        %s323 = scalar_lea.vmem %s3, 2
        %v324 = vld [vmem:[%s323] ss:$4 sm:$0x3]
        %v325 = vld [vmem:[#allocation2] sm:$0xff]
        %v326 = vld [vmem:[#allocation2 + $0x8] sm:$0xf]
        %v327 = vld [vmem:[#allocation2 + $0x10] sm:$0xff]
        %v328 = vld [vmem:[#allocation2 + $0x18] sm:$0xf]
        %333 = vrot.lane.b32.xlu0 %v325, 17
        %v334 = vpop.permute.xlu0 %333
        %335 = vrot.lane.b32.xlu0 %v326, 17
        %v336 = vpop.permute.xlu0 %335
        %337 = vrot.lane.b32.xlu0 %v327, 17
        %v338 = vpop.permute.xlu0 %337
        %339 = vrot.lane.b32.xlu0 %v328, 17
        %v340 = vpop.permute.xlu0 %339
        %v341 = vrot.slane %v334, 4
        %v342 = vrot.slane %v336, 4
        %v343 = vrot.slane %v338, 4
        %v344 = vrot.slane %v340, 4
        %vm345 = vcmask 1043456
        %v346 = vsel %vm345, %v341, %v342
        %vm347 = vcmask 138240
        %v348 = vsel %vm347, %v334, %v346
        %v349 = vsel %vm345, %v343, %v344
        %v350 = vsel %vm347, %v338, %v349
        %v353 = vmul.f32 %v318, %v348
        %v354 = vmul.f32 %v319, %v350
        %v357 = vcombine.high %v353, %v353
        %v358 = vcombine.high %v354, %v354
        %v361 = vsel %vm345, %v353, 0.0
        %v362 = vrot.slane %v361, 4
        %v363 = vadd.f32 %v361, %v362
        %v364 = vrot.slane %v363, 2
        %v365 = vadd.f32 %v363, %v364
        %v366 = vrot.slane %v365, 1
        %v367 = vadd.f32 %v365, %v366
        %v368 = vsel %vm345, %v357, 0.0
        %v369 = vrot.slane %v368, 4
        %v370 = vadd.f32 %v368, %v369
        %v371 = vrot.slane %v370, 2
        %v372 = vadd.f32 %v370, %v371
        %v373 = vrot.slane %v372, 1
        %v374 = vadd.f32 %v372, %v373
        %v375 = vsel %vm345, %v354, 0.0
        %v376 = vrot.slane %v375, 4
        %v377 = vadd.f32 %v375, %v376
        %v378 = vrot.slane %v377, 2
        %v379 = vadd.f32 %v377, %v378
        %v380 = vrot.slane %v379, 1
        %v381 = vadd.f32 %v379, %v380
        %v382 = vsel %vm345, %v358, 0.0
        %v383 = vrot.slane %v382, 4
        %v384 = vadd.f32 %v382, %v383
        %v385 = vrot.slane %v384, 2
        %v386 = vadd.f32 %v384, %v385
        %v387 = vrot.slane %v386, 1
        %v388 = vadd.f32 %v386, %v387
        %v390 = vlaneseq
        %v391 = vshrl.u32 %v390, 7
        %v392 = vsub.s32 0, %v391
        %v393 = vrot.slane %v320, %v392
        %v394 = vlaneseq
        %v395 = vshrl.u32 %v394, 7
        %v396 = vsub.s32 1, %v395
        %v397 = vrot.slane %v320, %v396
        %v400 = vmul.f32 %v367, %v393
        %v401 = vmul.f32 %v374, %v397
        %v402 = vmul.f32 %v381, %v393
        %v403 = vmul.f32 %v388, %v397
        %404 = vrot.lane.b32.xlu0 %v325, 16
        %v405 = vpop.permute.xlu0 %404
        %406 = vrot.lane.b32.xlu0 %v326, 16
        %v407 = vpop.permute.xlu0 %406
        %408 = vrot.lane.b32.xlu0 %v327, 16
        %v409 = vpop.permute.xlu0 %408
        %410 = vrot.lane.b32.xlu0 %v328, 16
        %v411 = vpop.permute.xlu0 %410
        %v412 = vrot.slane %v405, 4
        %v413 = vrot.slane %v407, 4
        %v414 = vrot.slane %v409, 4
        %v415 = vrot.slane %v411, 4
        %v416 = vsel %vm345, %v412, %v413
        %vm417 = vcmask 130048
        %v418 = vsel %vm417, %v405, %v416
        %v419 = vsel %vm345, %v414, %v415
        %v420 = vsel %vm417, %v409, %v419
        %v423 = vmul.f32 %v318, %v418
        %v424 = vmul.f32 %v319, %v420
        %v427 = vcombine.high %v423, %v423
        %v428 = vcombine.high %v424, %v424
        %v431 = vsel %vm345, %v423, 0.0
        %v432 = vrot.slane %v431, 4
        %v433 = vadd.f32 %v431, %v432
        %v434 = vrot.slane %v433, 2
        %v435 = vadd.f32 %v433, %v434
        %v436 = vrot.slane %v435, 1
        %v437 = vadd.f32 %v435, %v436
        %v438 = vsel %vm345, %v427, 0.0
        %v439 = vrot.slane %v438, 4
        %v440 = vadd.f32 %v438, %v439
        %v441 = vrot.slane %v440, 2
        %v442 = vadd.f32 %v440, %v441
        %v443 = vrot.slane %v442, 1
        %v444 = vadd.f32 %v442, %v443
        %v445 = vsel %vm345, %v424, 0.0
        %v446 = vrot.slane %v445, 4
        %v447 = vadd.f32 %v445, %v446
        %v448 = vrot.slane %v447, 2
        %v449 = vadd.f32 %v447, %v448
        %v450 = vrot.slane %v449, 1
        %v451 = vadd.f32 %v449, %v450
        %v452 = vsel %vm345, %v428, 0.0
        %v453 = vrot.slane %v452, 4
        %v454 = vadd.f32 %v452, %v453
        %v455 = vrot.slane %v454, 2
        %v456 = vadd.f32 %v454, %v455
        %v457 = vrot.slane %v456, 1
        %v458 = vadd.f32 %v456, %v457
        %v460 = vlaneseq
        %v461 = vshrl.u32 %v460, 7
        %v462 = vsub.s32 0, %v461
        %v463 = vrot.slane %v322, %v462
        %v464 = vlaneseq
        %v465 = vshrl.u32 %v464, 7
        %v466 = vsub.s32 1, %v465
        %v467 = vrot.slane %v322, %v466
        %v470 = vmul.f32 %v437, %v463
        %v471 = vmul.f32 %v444, %v467
        %v472 = vmul.f32 %v451, %v463
        %v473 = vmul.f32 %v458, %v467
        %v474 = vmax.f32 %v400, %v470
        %v475 = vmax.f32 %v401, %v471
        %v476 = vmax.f32 %v402, %v472
        %v477 = vmax.f32 %v403, %v473
        %478 = vrot.lane.b32.xlu0 %v325, 15
        %v479 = vpop.permute.xlu0 %478
        %480 = vrot.lane.b32.xlu0 %v326, 15
        %v481 = vpop.permute.xlu0 %480
        %482 = vrot.lane.b32.xlu0 %v327, 15
        %v483 = vpop.permute.xlu0 %482
        %484 = vrot.lane.b32.xlu0 %v328, 15
        %v485 = vpop.permute.xlu0 %484
        %v486 = vrot.slane %v479, 4
        %v487 = vrot.slane %v481, 4
        %v488 = vrot.slane %v483, 4
        %v489 = vrot.slane %v485, 4
        %v490 = vsel %vm345, %v486, %v487
        %vm491 = vcmask 121856
        %v492 = vsel %vm491, %v479, %v490
        %v493 = vsel %vm345, %v488, %v489
        %v494 = vsel %vm491, %v483, %v493
        %v497 = vmul.f32 %v318, %v492
        %v498 = vmul.f32 %v319, %v494
        %v501 = vcombine.high %v497, %v497
        %v502 = vcombine.high %v498, %v498
        %v505 = vsel %vm345, %v497, 0.0
        %v506 = vrot.slane %v505, 4
        %v507 = vadd.f32 %v505, %v506
        %v508 = vrot.slane %v507, 2
        %v509 = vadd.f32 %v507, %v508
        %v510 = vrot.slane %v509, 1
        %v511 = vadd.f32 %v509, %v510
        %v512 = vsel %vm345, %v501, 0.0
        %v513 = vrot.slane %v512, 4
        %v514 = vadd.f32 %v512, %v513
        %v515 = vrot.slane %v514, 2
        %v516 = vadd.f32 %v514, %v515
        %v517 = vrot.slane %v516, 1
        %v518 = vadd.f32 %v516, %v517
        %v519 = vsel %vm345, %v498, 0.0
        %v520 = vrot.slane %v519, 4
        %v521 = vadd.f32 %v519, %v520
        %v522 = vrot.slane %v521, 2
        %v523 = vadd.f32 %v521, %v522
        %v524 = vrot.slane %v523, 1
        %v525 = vadd.f32 %v523, %v524
        %v526 = vsel %vm345, %v502, 0.0
        %v527 = vrot.slane %v526, 4
        %v528 = vadd.f32 %v526, %v527
        %v529 = vrot.slane %v528, 2
        %v530 = vadd.f32 %v528, %v529
        %v531 = vrot.slane %v530, 1
        %v532 = vadd.f32 %v530, %v531
        %v534 = vlaneseq
        %v535 = vshrl.u32 %v534, 7
        %v536 = vsub.s32 0, %v535
        %v537 = vrot.slane %v324, %v536
        %v538 = vlaneseq
        %v539 = vshrl.u32 %v538, 7
        %v540 = vsub.s32 1, %v539
        %v541 = vrot.slane %v324, %v540
        %v544 = vmul.f32 %v511, %v537
        %v545 = vmul.f32 %v518, %v541
        %v546 = vmul.f32 %v525, %v537
        %v547 = vmul.f32 %v532, %v541
        %v548 = vmax.f32 %v474, %v544
        %v549 = vmax.f32 %v475, %v545
        %v550 = vmax.f32 %v476, %v546
        %v551 = vmax.f32 %v477, %v547
        %552 = vrot.lane.b32.xlu0 %v325, 1
        %v553 = vpop.permute.xlu0 %552
        %554 = vrot.lane.b32.xlu0 %v326, 1
        %v555 = vpop.permute.xlu0 %554
        %556 = vrot.lane.b32.xlu0 %v327, 1
        %v557 = vpop.permute.xlu0 %556
        %558 = vrot.lane.b32.xlu0 %v328, 1
        %v559 = vpop.permute.xlu0 %558
        %v560 = vrot.slane %v553, 4
        %v561 = vrot.slane %v555, 4
        %v562 = vrot.slane %v557, 4
        %v563 = vrot.slane %v559, 4
        %v564 = vsel %vm345, %v560, %v561
        %vm565 = vcmask 7168
        %v566 = vsel %vm565, %v553, %v564
        %v567 = vsel %vm345, %v562, %v563
        %v568 = vsel %vm565, %v557, %v567
        %v571 = vmul.f32 %v318, %v566
        %v572 = vmul.f32 %v319, %v568
        %v575 = vcombine.high %v571, %v571
        %v576 = vcombine.high %v572, %v572
        %v579 = vsel %vm345, %v571, 0.0
        %v580 = vrot.slane %v579, 4
        %v581 = vadd.f32 %v579, %v580
        %v582 = vrot.slane %v581, 2
        %v583 = vadd.f32 %v581, %v582
        %v584 = vrot.slane %v583, 1
        %v585 = vadd.f32 %v583, %v584
        %v586 = vsel %vm345, %v575, 0.0
        %v587 = vrot.slane %v586, 4
        %v588 = vadd.f32 %v586, %v587
        %v589 = vrot.slane %v588, 2
        %v590 = vadd.f32 %v588, %v589
        %v591 = vrot.slane %v590, 1
        %v592 = vadd.f32 %v590, %v591
        %v593 = vsel %vm345, %v572, 0.0
        %v594 = vrot.slane %v593, 4
        %v595 = vadd.f32 %v593, %v594
        %v596 = vrot.slane %v595, 2
        %v597 = vadd.f32 %v595, %v596
        %v598 = vrot.slane %v597, 1
        %v599 = vadd.f32 %v597, %v598
        %v600 = vsel %vm345, %v576, 0.0
        %v601 = vrot.slane %v600, 4
        %v602 = vadd.f32 %v600, %v601
        %v603 = vrot.slane %v602, 2
        %v604 = vadd.f32 %v602, %v603
        %v605 = vrot.slane %v604, 1
        %v606 = vadd.f32 %v604, %v605
        %v607 = vmul.f32 %v585, %v393
        %v608 = vmul.f32 %v592, %v397
        %v609 = vmul.f32 %v599, %v393
        %v610 = vmul.f32 %v606, %v397
        %v611 = vmax.f32 %v548, %v607
        %v612 = vmax.f32 %v549, %v608
        %v613 = vmax.f32 %v550, %v609
        %v614 = vmax.f32 %v551, %v610
        %v615 = vld [vmem:[#allocation2 + $0x4] sm:$0xff]
        %v616 = vld [vmem:[#allocation2 + $0x14] sm:$0xff]
        %v617 = vmul.f32 %v318, %v615
        %v618 = vmul.f32 %v319, %v616
        %v621 = vcombine.high %v617, %v617
        %v622 = vcombine.high %v618, %v618
        %v625 = vsel %vm345, %v617, 0.0
        %v626 = vrot.slane %v625, 4
        %v627 = vadd.f32 %v625, %v626
        %v628 = vrot.slane %v627, 2
        %v629 = vadd.f32 %v627, %v628
        %v630 = vrot.slane %v629, 1
        %v631 = vadd.f32 %v629, %v630
        %v632 = vsel %vm345, %v621, 0.0
        %v633 = vrot.slane %v632, 4
        %v634 = vadd.f32 %v632, %v633
        %v635 = vrot.slane %v634, 2
        %v636 = vadd.f32 %v634, %v635
        %v637 = vrot.slane %v636, 1
        %v638 = vadd.f32 %v636, %v637
        %v639 = vsel %vm345, %v618, 0.0
        %v640 = vrot.slane %v639, 4
        %v641 = vadd.f32 %v639, %v640
        %v642 = vrot.slane %v641, 2
        %v643 = vadd.f32 %v641, %v642
        %v644 = vrot.slane %v643, 1
        %v645 = vadd.f32 %v643, %v644
        %v646 = vsel %vm345, %v622, 0.0
        %v647 = vrot.slane %v646, 4
        %v648 = vadd.f32 %v646, %v647
        %v649 = vrot.slane %v648, 2
        %v650 = vadd.f32 %v648, %v649
        %v651 = vrot.slane %v650, 1
        %v652 = vadd.f32 %v650, %v651
        %v653 = vmul.f32 %v631, %v463
        %v654 = vmul.f32 %v638, %v467
        %v655 = vmul.f32 %v645, %v463
        %v656 = vmul.f32 %v652, %v467
        %v657 = vmax.f32 %v611, %v653
        %v658 = vmax.f32 %v612, %v654
        %v659 = vmax.f32 %v613, %v655
        %v660 = vmax.f32 %v614, %v656
        %v661 = vld [vmem:[#allocation2 + $0x4] sm:$0xff]
        %v662 = vld [vmem:[#allocation2 + $0xc] sm:$0xf]
        %v663 = vld [vmem:[#allocation2 + $0x14] sm:$0xff]
        %v664 = vld [vmem:[#allocation2 + $0x1c] sm:$0xf]
        %669 = vrot.lane.b32.xlu0 %v661, 127
        %v670 = vpop.permute.xlu0 %669
        %671 = vrot.lane.b32.xlu0 %v662, 127
        %v672 = vpop.permute.xlu0 %671
        %673 = vrot.lane.b32.xlu0 %v663, 127
        %v674 = vpop.permute.xlu0 %673
        %675 = vrot.lane.b32.xlu0 %v664, 127
        %v676 = vpop.permute.xlu0 %675
        %v677 = vrot.slane %v670, 4
        %v678 = vrot.slane %v672, 4
        %v679 = vrot.slane %v674, 4
        %v680 = vrot.slane %v676, 4
        %v681 = vsel %vm345, %v677, %v678
        %vm682 = vcmask 1039360
        %v683 = vsel %vm682, %v670, %v681
        %v684 = vsel %vm345, %v679, %v680
        %v685 = vsel %vm682, %v674, %v684
        %v688 = vmul.f32 %v318, %v683
        %v689 = vmul.f32 %v319, %v685
        %v692 = vcombine.high %v688, %v688
        %v693 = vcombine.high %v689, %v689
        %v696 = vsel %vm345, %v688, 0.0
        %v697 = vrot.slane %v696, 4
        %v698 = vadd.f32 %v696, %v697
        %v699 = vrot.slane %v698, 2
        %v700 = vadd.f32 %v698, %v699
        %v701 = vrot.slane %v700, 1
        %v702 = vadd.f32 %v700, %v701
        %v703 = vsel %vm345, %v692, 0.0
        %v704 = vrot.slane %v703, 4
        %v705 = vadd.f32 %v703, %v704
        %v706 = vrot.slane %v705, 2
        %v707 = vadd.f32 %v705, %v706
        %v708 = vrot.slane %v707, 1
        %v709 = vadd.f32 %v707, %v708
        %v710 = vsel %vm345, %v689, 0.0
        %v711 = vrot.slane %v710, 4
        %v712 = vadd.f32 %v710, %v711
        %v713 = vrot.slane %v712, 2
        %v714 = vadd.f32 %v712, %v713
        %v715 = vrot.slane %v714, 1
        %v716 = vadd.f32 %v714, %v715
        %v717 = vsel %vm345, %v693, 0.0
        %v718 = vrot.slane %v717, 4
        %v719 = vadd.f32 %v717, %v718
        %v720 = vrot.slane %v719, 2
        %v721 = vadd.f32 %v719, %v720
        %v722 = vrot.slane %v721, 1
        %v723 = vadd.f32 %v721, %v722
        %v724 = vmul.f32 %v702, %v537
        %v725 = vmul.f32 %v709, %v541
        %v726 = vmul.f32 %v716, %v537
        %v727 = vmul.f32 %v723, %v541
        %v728 = vmax.f32 %v657, %v724
        %v729 = vmax.f32 %v658, %v725
        %v730 = vmax.f32 %v659, %v726
        %v731 = vmax.f32 %v660, %v727
        %732 = vrot.lane.b32.xlu0 %v661, 113
        %v733 = vpop.permute.xlu0 %732
        %734 = vrot.lane.b32.xlu0 %v662, 113
        %v735 = vpop.permute.xlu0 %734
        %736 = vrot.lane.b32.xlu0 %v663, 113
        %v737 = vpop.permute.xlu0 %736
        %738 = vrot.lane.b32.xlu0 %v664, 113
        %v739 = vpop.permute.xlu0 %738
        %v740 = vrot.slane %v733, 4
        %v741 = vrot.slane %v735, 4
        %v742 = vrot.slane %v737, 4
        %v743 = vrot.slane %v739, 4
        %v744 = vsel %vm345, %v740, %v741
        %vm745 = vcmask 924672
        %v746 = vsel %vm745, %v733, %v744
        %v747 = vsel %vm345, %v742, %v743
        %v748 = vsel %vm745, %v737, %v747
        %v751 = vmul.f32 %v318, %v746
        %v752 = vmul.f32 %v319, %v748
        %v755 = vcombine.high %v751, %v751
        %v756 = vcombine.high %v752, %v752
        %v759 = vsel %vm345, %v751, 0.0
        %v760 = vrot.slane %v759, 4
        %v761 = vadd.f32 %v759, %v760
        %v762 = vrot.slane %v761, 2
        %v763 = vadd.f32 %v761, %v762
        %v764 = vrot.slane %v763, 1
        %v765 = vadd.f32 %v763, %v764
        %v766 = vsel %vm345, %v755, 0.0
        %v767 = vrot.slane %v766, 4
        %v768 = vadd.f32 %v766, %v767
        %v769 = vrot.slane %v768, 2
        %v770 = vadd.f32 %v768, %v769
        %v771 = vrot.slane %v770, 1
        %v772 = vadd.f32 %v770, %v771
        %v773 = vsel %vm345, %v752, 0.0
        %v774 = vrot.slane %v773, 4
        %v775 = vadd.f32 %v773, %v774
        %v776 = vrot.slane %v775, 2
        %v777 = vadd.f32 %v775, %v776
        %v778 = vrot.slane %v777, 1
        %v779 = vadd.f32 %v777, %v778
        %v780 = vsel %vm345, %v756, 0.0
        %v781 = vrot.slane %v780, 4
        %v782 = vadd.f32 %v780, %v781
        %v783 = vrot.slane %v782, 2
        %v784 = vadd.f32 %v782, %v783
        %v785 = vrot.slane %v784, 1
        %v786 = vadd.f32 %v784, %v785
        %v787 = vmul.f32 %v765, %v393
        %v788 = vmul.f32 %v772, %v397
        %v789 = vmul.f32 %v779, %v393
        %v790 = vmul.f32 %v786, %v397
        %v791 = vmax.f32 %v728, %v787
        %v792 = vmax.f32 %v729, %v788
        %v793 = vmax.f32 %v730, %v789
        %v794 = vmax.f32 %v731, %v790
        %795 = vrot.lane.b32.xlu0 %v661, 112
        %v796 = vpop.permute.xlu0 %795
        %797 = vrot.lane.b32.xlu0 %v662, 112
        %v798 = vpop.permute.xlu0 %797
        %799 = vrot.lane.b32.xlu0 %v663, 112
        %v800 = vpop.permute.xlu0 %799
        %801 = vrot.lane.b32.xlu0 %v664, 112
        %v802 = vpop.permute.xlu0 %801
        %v803 = vrot.slane %v796, 4
        %v804 = vrot.slane %v798, 4
        %v805 = vrot.slane %v800, 4
        %v806 = vrot.slane %v802, 4
        %v807 = vsel %vm345, %v803, %v804
        %vm808 = vcmask 916480
        %v809 = vsel %vm808, %v796, %v807
        %v810 = vsel %vm345, %v805, %v806
        %v811 = vsel %vm808, %v800, %v810
        %v814 = vmul.f32 %v318, %v809
        %v815 = vmul.f32 %v319, %v811
        %v818 = vcombine.high %v814, %v814
        %v819 = vcombine.high %v815, %v815
        %v822 = vsel %vm345, %v814, 0.0
        %v823 = vrot.slane %v822, 4
        %v824 = vadd.f32 %v822, %v823
        %v825 = vrot.slane %v824, 2
        %v826 = vadd.f32 %v824, %v825
        %v827 = vrot.slane %v826, 1
        %v828 = vadd.f32 %v826, %v827
        %v829 = vsel %vm345, %v818, 0.0
        %v830 = vrot.slane %v829, 4
        %v831 = vadd.f32 %v829, %v830
        %v832 = vrot.slane %v831, 2
        %v833 = vadd.f32 %v831, %v832
        %v834 = vrot.slane %v833, 1
        %v835 = vadd.f32 %v833, %v834
        %v836 = vsel %vm345, %v815, 0.0
        %v837 = vrot.slane %v836, 4
        %v838 = vadd.f32 %v836, %v837
        %v839 = vrot.slane %v838, 2
        %v840 = vadd.f32 %v838, %v839
        %v841 = vrot.slane %v840, 1
        %v842 = vadd.f32 %v840, %v841
        %v843 = vsel %vm345, %v819, 0.0
        %v844 = vrot.slane %v843, 4
        %v845 = vadd.f32 %v843, %v844
        %v846 = vrot.slane %v845, 2
        %v847 = vadd.f32 %v845, %v846
        %v848 = vrot.slane %v847, 1
        %v849 = vadd.f32 %v847, %v848
        %v850 = vmul.f32 %v828, %v463
        %v851 = vmul.f32 %v835, %v467
        %v852 = vmul.f32 %v842, %v463
        %v853 = vmul.f32 %v849, %v467
        %v854 = vmax.f32 %v791, %v850
        %v855 = vmax.f32 %v792, %v851
        %v856 = vmax.f32 %v793, %v852
        %v857 = vmax.f32 %v794, %v853
        %858 = vrot.lane.b32.xlu0 %v661, 111
        %v859 = vpop.permute.xlu0 %858
        %860 = vrot.lane.b32.xlu0 %v662, 111
        %v861 = vpop.permute.xlu0 %860
        %862 = vrot.lane.b32.xlu0 %v663, 111
        %v863 = vpop.permute.xlu0 %862
        %864 = vrot.lane.b32.xlu0 %v664, 111
        %v865 = vpop.permute.xlu0 %864
        %v866 = vrot.slane %v859, 4
        %v867 = vrot.slane %v861, 4
        %v868 = vrot.slane %v863, 4
        %v869 = vrot.slane %v865, 4
        %v870 = vsel %vm345, %v866, %v867
        %vm871 = vcmask 908288
        %v872 = vsel %vm871, %v859, %v870
        %v873 = vsel %vm345, %v868, %v869
        %v874 = vsel %vm871, %v863, %v873
        %v877 = vmul.f32 %v318, %v872
        %v878 = vmul.f32 %v319, %v874
        %v881 = vcombine.high %v877, %v877
        %v882 = vcombine.high %v878, %v878
        %v885 = vsel %vm345, %v877, 0.0
        %v886 = vrot.slane %v885, 4
        %v887 = vadd.f32 %v885, %v886
        %v888 = vrot.slane %v887, 2
        %v889 = vadd.f32 %v887, %v888
        %v890 = vrot.slane %v889, 1
        %v891 = vadd.f32 %v889, %v890
        %v892 = vsel %vm345, %v881, 0.0
        %v893 = vrot.slane %v892, 4
        %v894 = vadd.f32 %v892, %v893
        %v895 = vrot.slane %v894, 2
        %v896 = vadd.f32 %v894, %v895
        %v897 = vrot.slane %v896, 1
        %v898 = vadd.f32 %v896, %v897
        %v899 = vsel %vm345, %v878, 0.0
        %v900 = vrot.slane %v899, 4
        %v901 = vadd.f32 %v899, %v900
        %v902 = vrot.slane %v901, 2
        %v903 = vadd.f32 %v901, %v902
        %v904 = vrot.slane %v903, 1
        %v905 = vadd.f32 %v903, %v904
        %v906 = vsel %vm345, %v882, 0.0
        %v907 = vrot.slane %v906, 4
        %v908 = vadd.f32 %v906, %v907
        %v909 = vrot.slane %v908, 2
        %v910 = vadd.f32 %v908, %v909
        %v911 = vrot.slane %v910, 1
        %v912 = vadd.f32 %v910, %v911
        %v913 = vmul.f32 %v891, %v537
        %v914 = vmul.f32 %v898, %v541
        %v915 = vmul.f32 %v905, %v537
        %v916 = vmul.f32 %v912, %v541
        %v917 = vmax.f32 %v854, %v913
        %v918 = vmax.f32 %v855, %v914
        %v919 = vmax.f32 %v856, %v915
        %v920 = vmax.f32 %v857, %v916
        %v921 = vsub.f32 %v400, %v917
        %v922 = vsub.f32 %v401, %v918
        %v923 = vsub.f32 %v402, %v919
        %v924 = vsub.f32 %v403, %v920
        %v925 = vmul.f32 %v921, 1.442695
        %v926 = vpow.pop %v925
        %v927 = vmul.f32 %v922, 1.442695
        %v928 = vpow.pop %v927
        %v929 = vmul.f32 %v923, 1.442695
        %v930 = vpow.pop %v929
        %v931 = vmul.f32 %v924, 1.442695
        %v932 = vpow.pop %v931
        %v933 = vld [vmem:[#allocation3] sm:$0xff]
        %v934 = vld [vmem:[#allocation3 + $0x8] sm:$0xf]
        %v935 = vld [vmem:[#allocation3 + $0x10] sm:$0xff]
        %v936 = vld [vmem:[#allocation3 + $0x18] sm:$0xf]
        %v937 = vmul.f32 %v926, %v393
        %v938 = vmul.f32 %v928, %v397
        %v939 = vmul.f32 %v930, %v393
        %v940 = vmul.f32 %v932, %v397
        %v941 = vlaneseq
        %v942 = vshrl.u32 %v941, 7
        %v943 = vsub.s32 0, %v942
        %v944 = vrot.slane %v937, %v943
        %v945 = vlaneseq
        %v946 = vshrl.u32 %v945, 7
        %v947 = vsub.s32 0, %v946
        %v948 = vrot.slane %v938, %v947
        %v949 = vlaneseq
        %v950 = vshrl.u32 %v949, 7
        %v951 = vsub.s32 0, %v950
        %v952 = vrot.slane %v939, %v951
        %v953 = vlaneseq
        %v954 = vshrl.u32 %v953, 7
        %v955 = vsub.s32 0, %v954
        %v956 = vrot.slane %v940, %v955
        %v961 = vcombine.high %v933, %v933
        %v962 = vcombine.high %v935, %v935
        %963 = vrot.lane.b32.xlu0 %v933, 17
        %v964 = vpop.permute.xlu0 %963
        %965 = vrot.lane.b32.xlu0 %v961, 17
        %v966 = vpop.permute.xlu0 %965
        %967 = vrot.lane.b32.xlu0 %v934, 17
        %v968 = vpop.permute.xlu0 %967
        %969 = vrot.lane.b32.xlu0 %v935, 17
        %v970 = vpop.permute.xlu0 %969
        %971 = vrot.lane.b32.xlu0 %v962, 17
        %v972 = vpop.permute.xlu0 %971
        %973 = vrot.lane.b32.xlu0 %v936, 17
        %v974 = vpop.permute.xlu0 %973
        %v975 = vsel %vm347, %v964, %v966
        %v976 = vsel %vm347, %v966, %v968
        %v977 = vsel %vm347, %v970, %v972
        %v978 = vsel %vm347, %v972, %v974
        %v983 = vmul.f32 %v944, %v975
        %v984 = vmul.f32 %v948, %v976
        %v985 = vmul.f32 %v952, %v977
        %v986 = vmul.f32 %v956, %v978
        %v987 = vsub.f32 %v470, %v917
        %v988 = vsub.f32 %v471, %v918
        %v989 = vsub.f32 %v472, %v919
        %v990 = vsub.f32 %v473, %v920
        %v991 = vmul.f32 %v987, 1.442695
        %v992 = vpow.pop %v991
        %v993 = vmul.f32 %v988, 1.442695
        %v994 = vpow.pop %v993
        %v995 = vmul.f32 %v989, 1.442695
        %v996 = vpow.pop %v995
        %v997 = vmul.f32 %v990, 1.442695
        %v998 = vpow.pop %v997
        %v999 = vadd.f32 %v926, %v992
        %v1000 = vadd.f32 %v928, %v994
        %v1001 = vadd.f32 %v930, %v996
        %v1002 = vadd.f32 %v932, %v998
        %v1003 = vmul.f32 %v992, %v463
        %v1004 = vmul.f32 %v994, %v467
        %v1005 = vmul.f32 %v996, %v463
        %v1006 = vmul.f32 %v998, %v467
        %v1007 = vlaneseq
        %v1008 = vshrl.u32 %v1007, 7
        %v1009 = vsub.s32 0, %v1008
        %v1010 = vrot.slane %v1003, %v1009
        %v1011 = vlaneseq
        %v1012 = vshrl.u32 %v1011, 7
        %v1013 = vsub.s32 0, %v1012
        %v1014 = vrot.slane %v1004, %v1013
        %v1015 = vlaneseq
        %v1016 = vshrl.u32 %v1015, 7
        %v1017 = vsub.s32 0, %v1016
        %v1018 = vrot.slane %v1005, %v1017
        %v1019 = vlaneseq
        %v1020 = vshrl.u32 %v1019, 7
        %v1021 = vsub.s32 0, %v1020
        %v1022 = vrot.slane %v1006, %v1021
        %1023 = vrot.lane.b32.xlu0 %v933, 16
        %v1024 = vpop.permute.xlu0 %1023
        %1025 = vrot.lane.b32.xlu0 %v961, 16
        %v1026 = vpop.permute.xlu0 %1025
        %1027 = vrot.lane.b32.xlu0 %v934, 16
        %v1028 = vpop.permute.xlu0 %1027
        %1029 = vrot.lane.b32.xlu0 %v935, 16
        %v1030 = vpop.permute.xlu0 %1029
        %1031 = vrot.lane.b32.xlu0 %v962, 16
        %v1032 = vpop.permute.xlu0 %1031
        %1033 = vrot.lane.b32.xlu0 %v936, 16
        %v1034 = vpop.permute.xlu0 %1033
        %v1035 = vsel %vm417, %v1024, %v1026
        %v1036 = vsel %vm417, %v1026, %v1028
        %v1037 = vsel %vm417, %v1030, %v1032
        %v1038 = vsel %vm417, %v1032, %v1034
        %v1043 = vmul.f32 %v1010, %v1035
        %v1044 = vmul.f32 %v1014, %v1036
        %v1045 = vmul.f32 %v1018, %v1037
        %v1046 = vmul.f32 %v1022, %v1038
        %v1047 = vadd.f32 %v983, %v1043
        %v1048 = vadd.f32 %v984, %v1044
        %v1049 = vadd.f32 %v985, %v1045
        %v1050 = vadd.f32 %v986, %v1046
        %v1051 = vsub.f32 %v544, %v917
        %v1052 = vsub.f32 %v545, %v918
        %v1053 = vsub.f32 %v546, %v919
        %v1054 = vsub.f32 %v547, %v920
        %v1055 = vmul.f32 %v1051, 1.442695
        %v1056 = vpow.pop %v1055
        %v1057 = vmul.f32 %v1052, 1.442695
        %v1058 = vpow.pop %v1057
        %v1059 = vmul.f32 %v1053, 1.442695
        %v1060 = vpow.pop %v1059
        %v1061 = vmul.f32 %v1054, 1.442695
        %v1062 = vpow.pop %v1061
        %v1063 = vadd.f32 %v999, %v1056
        %v1064 = vadd.f32 %v1000, %v1058
        %v1065 = vadd.f32 %v1001, %v1060
        %v1066 = vadd.f32 %v1002, %v1062
        %v1067 = vmul.f32 %v1056, %v537
        %v1068 = vmul.f32 %v1058, %v541
        %v1069 = vmul.f32 %v1060, %v537
        %v1070 = vmul.f32 %v1062, %v541
        %v1071 = vlaneseq
        %v1072 = vshrl.u32 %v1071, 7
        %v1073 = vsub.s32 0, %v1072
        %v1074 = vrot.slane %v1067, %v1073
        %v1075 = vlaneseq
        %v1076 = vshrl.u32 %v1075, 7
        %v1077 = vsub.s32 0, %v1076
        %v1078 = vrot.slane %v1068, %v1077
        %v1079 = vlaneseq
        %v1080 = vshrl.u32 %v1079, 7
        %v1081 = vsub.s32 0, %v1080
        %v1082 = vrot.slane %v1069, %v1081
        %v1083 = vlaneseq
        %v1084 = vshrl.u32 %v1083, 7
        %v1085 = vsub.s32 0, %v1084
        %v1086 = vrot.slane %v1070, %v1085
        %1087 = vrot.lane.b32.xlu0 %v933, 15
        %v1088 = vpop.permute.xlu0 %1087
        %1089 = vrot.lane.b32.xlu0 %v961, 15
        %v1090 = vpop.permute.xlu0 %1089
        %1091 = vrot.lane.b32.xlu0 %v934, 15
        %v1092 = vpop.permute.xlu0 %1091
        %1093 = vrot.lane.b32.xlu0 %v935, 15
        %v1094 = vpop.permute.xlu0 %1093
        %1095 = vrot.lane.b32.xlu0 %v962, 15
        %v1096 = vpop.permute.xlu0 %1095
        %1097 = vrot.lane.b32.xlu0 %v936, 15
        %v1098 = vpop.permute.xlu0 %1097
        %v1099 = vsel %vm491, %v1088, %v1090
        %v1100 = vsel %vm491, %v1090, %v1092
        %v1101 = vsel %vm491, %v1094, %v1096
        %v1102 = vsel %vm491, %v1096, %v1098
        %v1107 = vmul.f32 %v1074, %v1099
        %v1108 = vmul.f32 %v1078, %v1100
        %v1109 = vmul.f32 %v1082, %v1101
        %v1110 = vmul.f32 %v1086, %v1102
        %v1111 = vadd.f32 %v1047, %v1107
        %v1112 = vadd.f32 %v1048, %v1108
        %v1113 = vadd.f32 %v1049, %v1109
        %v1114 = vadd.f32 %v1050, %v1110
        %v1115 = vsub.f32 %v607, %v917
        %v1116 = vsub.f32 %v608, %v918
        %v1117 = vsub.f32 %v609, %v919
        %v1118 = vsub.f32 %v610, %v920
        %v1119 = vmul.f32 %v1115, 1.442695
        %v1120 = vpow.pop %v1119
        %v1121 = vmul.f32 %v1116, 1.442695
        %v1122 = vpow.pop %v1121
        %v1123 = vmul.f32 %v1117, 1.442695
        %v1124 = vpow.pop %v1123
        %v1125 = vmul.f32 %v1118, 1.442695
        %v1126 = vpow.pop %v1125
        %v1127 = vadd.f32 %v1063, %v1120
        %v1128 = vadd.f32 %v1064, %v1122
        %v1129 = vadd.f32 %v1065, %v1124
        %v1130 = vadd.f32 %v1066, %v1126
        %v1131 = vmul.f32 %v1120, %v393
        %v1132 = vmul.f32 %v1122, %v397
        %v1133 = vmul.f32 %v1124, %v393
        %v1134 = vmul.f32 %v1126, %v397
        %v1135 = vlaneseq
        %v1136 = vshrl.u32 %v1135, 7
        %v1137 = vsub.s32 0, %v1136
        %v1138 = vrot.slane %v1131, %v1137
        %v1139 = vlaneseq
        %v1140 = vshrl.u32 %v1139, 7
        %v1141 = vsub.s32 0, %v1140
        %v1142 = vrot.slane %v1132, %v1141
        %v1143 = vlaneseq
        %v1144 = vshrl.u32 %v1143, 7
        %v1145 = vsub.s32 0, %v1144
        %v1146 = vrot.slane %v1133, %v1145
        %v1147 = vlaneseq
        %v1148 = vshrl.u32 %v1147, 7
        %v1149 = vsub.s32 0, %v1148
        %v1150 = vrot.slane %v1134, %v1149
        %1151 = vrot.lane.b32.xlu0 %v933, 1
        %v1152 = vpop.permute.xlu0 %1151
        %1153 = vrot.lane.b32.xlu0 %v961, 1
        %v1154 = vpop.permute.xlu0 %1153
        %1155 = vrot.lane.b32.xlu0 %v934, 1
        %v1156 = vpop.permute.xlu0 %1155
        %1157 = vrot.lane.b32.xlu0 %v935, 1
        %v1158 = vpop.permute.xlu0 %1157
        %1159 = vrot.lane.b32.xlu0 %v962, 1
        %v1160 = vpop.permute.xlu0 %1159
        %1161 = vrot.lane.b32.xlu0 %v936, 1
        %v1162 = vpop.permute.xlu0 %1161
        %v1163 = vsel %vm565, %v1152, %v1154
        %v1164 = vsel %vm565, %v1154, %v1156
        %v1165 = vsel %vm565, %v1158, %v1160
        %v1166 = vsel %vm565, %v1160, %v1162
        %v1171 = vmul.f32 %v1138, %v1163
        %v1172 = vmul.f32 %v1142, %v1164
        %v1173 = vmul.f32 %v1146, %v1165
        %v1174 = vmul.f32 %v1150, %v1166
        %v1175 = vadd.f32 %v1111, %v1171
        %v1176 = vadd.f32 %v1112, %v1172
        %v1177 = vadd.f32 %v1113, %v1173
        %v1178 = vadd.f32 %v1114, %v1174
        %v1179 = vsub.f32 %v653, %v917
        %v1180 = vsub.f32 %v654, %v918
        %v1181 = vsub.f32 %v655, %v919
        %v1182 = vsub.f32 %v656, %v920
        %v1183 = vmul.f32 %v1179, 1.442695
        %v1184 = vpow.pop %v1183
        %v1185 = vmul.f32 %v1180, 1.442695
        %v1186 = vpow.pop %v1185
        %v1187 = vmul.f32 %v1181, 1.442695
        %v1188 = vpow.pop %v1187
        %v1189 = vmul.f32 %v1182, 1.442695
        %v1190 = vpow.pop %v1189
        %v1191 = vadd.f32 %v1127, %v1184
        %v1192 = vadd.f32 %v1128, %v1186
        %v1193 = vadd.f32 %v1129, %v1188
        %v1194 = vadd.f32 %v1130, %v1190
        %v1195 = vld [vmem:[#allocation3 + $0x4] sm:$0xff]
        %v1196 = vld [vmem:[#allocation3 + $0x14] sm:$0xff]
        %v1197 = vmul.f32 %v1184, %v463
        %v1198 = vmul.f32 %v1186, %v467
        %v1199 = vmul.f32 %v1188, %v463
        %v1200 = vmul.f32 %v1190, %v467
        %v1201 = vlaneseq
        %v1202 = vshrl.u32 %v1201, 7
        %v1203 = vsub.s32 0, %v1202
        %v1204 = vrot.slane %v1197, %v1203
        %v1205 = vlaneseq
        %v1206 = vshrl.u32 %v1205, 7
        %v1207 = vsub.s32 0, %v1206
        %v1208 = vrot.slane %v1198, %v1207
        %v1209 = vlaneseq
        %v1210 = vshrl.u32 %v1209, 7
        %v1211 = vsub.s32 0, %v1210
        %v1212 = vrot.slane %v1199, %v1211
        %v1213 = vlaneseq
        %v1214 = vshrl.u32 %v1213, 7
        %v1215 = vsub.s32 0, %v1214
        %v1216 = vrot.slane %v1200, %v1215
        %v1219 = vcombine.high %v1195, %v1195
        %v1220 = vcombine.high %v1196, %v1196
        %v1223 = vmul.f32 %v1204, %v1195
        %v1224 = vmul.f32 %v1208, %v1219
        %v1225 = vmul.f32 %v1212, %v1196
        %v1226 = vmul.f32 %v1216, %v1220
        %v1227 = vadd.f32 %v1175, %v1223
        %v1228 = vadd.f32 %v1176, %v1224
        %v1229 = vadd.f32 %v1177, %v1225
        %v1230 = vadd.f32 %v1178, %v1226
        %v1231 = vsub.f32 %v724, %v917
        %v1232 = vsub.f32 %v725, %v918
        %v1233 = vsub.f32 %v726, %v919
        %v1234 = vsub.f32 %v727, %v920
        %v1235 = vmul.f32 %v1231, 1.442695
        %v1236 = vpow.pop %v1235
        %v1237 = vmul.f32 %v1232, 1.442695
        %v1238 = vpow.pop %v1237
        %v1239 = vmul.f32 %v1233, 1.442695
        %v1240 = vpow.pop %v1239
        %v1241 = vmul.f32 %v1234, 1.442695
        %v1242 = vpow.pop %v1241
        %v1243 = vadd.f32 %v1191, %v1236
        %v1244 = vadd.f32 %v1192, %v1238
        %v1245 = vadd.f32 %v1193, %v1240
        %v1246 = vadd.f32 %v1194, %v1242
        %v1247 = vld [vmem:[#allocation3 + $0x4] sm:$0xff]
        %v1248 = vld [vmem:[#allocation3 + $0xc] sm:$0xf]
        %v1249 = vld [vmem:[#allocation3 + $0x14] sm:$0xff]
        %v1250 = vld [vmem:[#allocation3 + $0x1c] sm:$0xf]
        %v1251 = vmul.f32 %v1236, %v537
        %v1252 = vmul.f32 %v1238, %v541
        %v1253 = vmul.f32 %v1240, %v537
        %v1254 = vmul.f32 %v1242, %v541
        %v1255 = vlaneseq
        %v1256 = vshrl.u32 %v1255, 7
        %v1257 = vsub.s32 0, %v1256
        %v1258 = vrot.slane %v1251, %v1257
        %v1259 = vlaneseq
        %v1260 = vshrl.u32 %v1259, 7
        %v1261 = vsub.s32 0, %v1260
        %v1262 = vrot.slane %v1252, %v1261
        %v1263 = vlaneseq
        %v1264 = vshrl.u32 %v1263, 7
        %v1265 = vsub.s32 0, %v1264
        %v1266 = vrot.slane %v1253, %v1265
        %v1267 = vlaneseq
        %v1268 = vshrl.u32 %v1267, 7
        %v1269 = vsub.s32 0, %v1268
        %v1270 = vrot.slane %v1254, %v1269
        %v1275 = vcombine.high %v1247, %v1247
        %v1276 = vcombine.high %v1249, %v1249
        %1277 = vrot.lane.b32.xlu0 %v1247, 127
        %v1278 = vpop.permute.xlu0 %1277
        %1279 = vrot.lane.b32.xlu0 %v1275, 127
        %v1280 = vpop.permute.xlu0 %1279
        %1281 = vrot.lane.b32.xlu0 %v1248, 127
        %v1282 = vpop.permute.xlu0 %1281
        %1283 = vrot.lane.b32.xlu0 %v1249, 127
        %v1284 = vpop.permute.xlu0 %1283
        %1285 = vrot.lane.b32.xlu0 %v1276, 127
        %v1286 = vpop.permute.xlu0 %1285
        %1287 = vrot.lane.b32.xlu0 %v1250, 127
        %v1288 = vpop.permute.xlu0 %1287
        %v1289 = vsel %vm682, %v1278, %v1280
        %v1290 = vsel %vm682, %v1280, %v1282
        %v1291 = vsel %vm682, %v1284, %v1286
        %v1292 = vsel %vm682, %v1286, %v1288
        %v1297 = vmul.f32 %v1258, %v1289
        %v1298 = vmul.f32 %v1262, %v1290
        %v1299 = vmul.f32 %v1266, %v1291
        %v1300 = vmul.f32 %v1270, %v1292
        %v1301 = vadd.f32 %v1227, %v1297
        %v1302 = vadd.f32 %v1228, %v1298
        %v1303 = vadd.f32 %v1229, %v1299
        %v1304 = vadd.f32 %v1230, %v1300
        %v1305 = vsub.f32 %v787, %v917
        %v1306 = vsub.f32 %v788, %v918
        %v1307 = vsub.f32 %v789, %v919
        %v1308 = vsub.f32 %v790, %v920
        %v1309 = vmul.f32 %v1305, 1.442695
        %v1310 = vpow.pop %v1309
        %v1311 = vmul.f32 %v1306, 1.442695
        %v1312 = vpow.pop %v1311
        %v1313 = vmul.f32 %v1307, 1.442695
        %v1314 = vpow.pop %v1313
        %v1315 = vmul.f32 %v1308, 1.442695
        %v1316 = vpow.pop %v1315
        %v1317 = vadd.f32 %v1243, %v1310
        %v1318 = vadd.f32 %v1244, %v1312
        %v1319 = vadd.f32 %v1245, %v1314
        %v1320 = vadd.f32 %v1246, %v1316
        %v1321 = vmul.f32 %v1310, %v393
        %v1322 = vmul.f32 %v1312, %v397
        %v1323 = vmul.f32 %v1314, %v393
        %v1324 = vmul.f32 %v1316, %v397
        %v1325 = vlaneseq
        %v1326 = vshrl.u32 %v1325, 7
        %v1327 = vsub.s32 0, %v1326
        %v1328 = vrot.slane %v1321, %v1327
        %v1329 = vlaneseq
        %v1330 = vshrl.u32 %v1329, 7
        %v1331 = vsub.s32 0, %v1330
        %v1332 = vrot.slane %v1322, %v1331
        %v1333 = vlaneseq
        %v1334 = vshrl.u32 %v1333, 7
        %v1335 = vsub.s32 0, %v1334
        %v1336 = vrot.slane %v1323, %v1335
        %v1337 = vlaneseq
        %v1338 = vshrl.u32 %v1337, 7
        %v1339 = vsub.s32 0, %v1338
        %v1340 = vrot.slane %v1324, %v1339
        %1341 = vrot.lane.b32.xlu0 %v1247, 113
        %v1342 = vpop.permute.xlu0 %1341
        %1343 = vrot.lane.b32.xlu0 %v1275, 113
        %v1344 = vpop.permute.xlu0 %1343
        %1345 = vrot.lane.b32.xlu0 %v1248, 113
        %v1346 = vpop.permute.xlu0 %1345
        %1347 = vrot.lane.b32.xlu0 %v1249, 113
        %v1348 = vpop.permute.xlu0 %1347
        %1349 = vrot.lane.b32.xlu0 %v1276, 113
        %v1350 = vpop.permute.xlu0 %1349
        %1351 = vrot.lane.b32.xlu0 %v1250, 113
        %v1352 = vpop.permute.xlu0 %1351
        %v1353 = vsel %vm745, %v1342, %v1344
        %v1354 = vsel %vm745, %v1344, %v1346
        %v1355 = vsel %vm745, %v1348, %v1350
        %v1356 = vsel %vm745, %v1350, %v1352
        %v1361 = vmul.f32 %v1328, %v1353
        %v1362 = vmul.f32 %v1332, %v1354
        %v1363 = vmul.f32 %v1336, %v1355
        %v1364 = vmul.f32 %v1340, %v1356
        %v1365 = vadd.f32 %v1301, %v1361
        %v1366 = vadd.f32 %v1302, %v1362
        %v1367 = vadd.f32 %v1303, %v1363
        %v1368 = vadd.f32 %v1304, %v1364
        %v1369 = vsub.f32 %v850, %v917
        %v1370 = vsub.f32 %v851, %v918
        %v1371 = vsub.f32 %v852, %v919
        %v1372 = vsub.f32 %v853, %v920
        %v1373 = vmul.f32 %v1369, 1.442695
        %v1374 = vpow.pop %v1373
        %v1375 = vmul.f32 %v1370, 1.442695
        %v1376 = vpow.pop %v1375
        %v1377 = vmul.f32 %v1371, 1.442695
        %v1378 = vpow.pop %v1377
        %v1379 = vmul.f32 %v1372, 1.442695
        %v1380 = vpow.pop %v1379
        %v1381 = vadd.f32 %v1317, %v1374
        %v1382 = vadd.f32 %v1318, %v1376
        %v1383 = vadd.f32 %v1319, %v1378
        %v1384 = vadd.f32 %v1320, %v1380
        %v1385 = vmul.f32 %v1374, %v463
        %v1386 = vmul.f32 %v1376, %v467
        %v1387 = vmul.f32 %v1378, %v463
        %v1388 = vmul.f32 %v1380, %v467
        %v1389 = vlaneseq
        %v1390 = vshrl.u32 %v1389, 7
        %v1391 = vsub.s32 0, %v1390
        %v1392 = vrot.slane %v1385, %v1391
        %v1393 = vlaneseq
        %v1394 = vshrl.u32 %v1393, 7
        %v1395 = vsub.s32 0, %v1394
        %v1396 = vrot.slane %v1386, %v1395
        %v1397 = vlaneseq
        %v1398 = vshrl.u32 %v1397, 7
        %v1399 = vsub.s32 0, %v1398
        %v1400 = vrot.slane %v1387, %v1399
        %v1401 = vlaneseq
        %v1402 = vshrl.u32 %v1401, 7
        %v1403 = vsub.s32 0, %v1402
        %v1404 = vrot.slane %v1388, %v1403
        %1405 = vrot.lane.b32.xlu0 %v1247, 112
        %v1406 = vpop.permute.xlu0 %1405
        %1407 = vrot.lane.b32.xlu0 %v1275, 112
        %v1408 = vpop.permute.xlu0 %1407
        %1409 = vrot.lane.b32.xlu0 %v1248, 112
        %v1410 = vpop.permute.xlu0 %1409
        %1411 = vrot.lane.b32.xlu0 %v1249, 112
        %v1412 = vpop.permute.xlu0 %1411
        %1413 = vrot.lane.b32.xlu0 %v1276, 112
        %v1414 = vpop.permute.xlu0 %1413
        %1415 = vrot.lane.b32.xlu0 %v1250, 112
        %v1416 = vpop.permute.xlu0 %1415
        %v1417 = vsel %vm808, %v1406, %v1408
        %v1418 = vsel %vm808, %v1408, %v1410
        %v1419 = vsel %vm808, %v1412, %v1414
        %v1420 = vsel %vm808, %v1414, %v1416
        %v1425 = vmul.f32 %v1392, %v1417
        %v1426 = vmul.f32 %v1396, %v1418
        %v1427 = vmul.f32 %v1400, %v1419
        %v1428 = vmul.f32 %v1404, %v1420
        %v1429 = vadd.f32 %v1365, %v1425
        %v1430 = vadd.f32 %v1366, %v1426
        %v1431 = vadd.f32 %v1367, %v1427
        %v1432 = vadd.f32 %v1368, %v1428
        %v1433 = vsub.f32 %v913, %v917
        %v1434 = vsub.f32 %v914, %v918
        %v1435 = vsub.f32 %v915, %v919
        %v1436 = vsub.f32 %v916, %v920
        %v1437 = vmul.f32 %v1433, 1.442695
        %v1438 = vpow.pop %v1437
        %v1439 = vmul.f32 %v1434, 1.442695
        %v1440 = vpow.pop %v1439
        %v1441 = vmul.f32 %v1435, 1.442695
        %v1442 = vpow.pop %v1441
        %v1443 = vmul.f32 %v1436, 1.442695
        %v1444 = vpow.pop %v1443
        %v1445 = vadd.f32 %v1381, %v1438
        %v1446 = vadd.f32 %v1382, %v1440
        %v1447 = vadd.f32 %v1383, %v1442
        %v1448 = vadd.f32 %v1384, %v1444
        %v1449 = vmul.f32 %v1438, %v537
        %v1450 = vmul.f32 %v1440, %v541
        %v1451 = vmul.f32 %v1442, %v537
        %v1452 = vmul.f32 %v1444, %v541
        %v1453 = vlaneseq
        %v1454 = vshrl.u32 %v1453, 7
        %v1455 = vsub.s32 0, %v1454
        %v1456 = vrot.slane %v1449, %v1455
        %v1457 = vlaneseq
        %v1458 = vshrl.u32 %v1457, 7
        %v1459 = vsub.s32 0, %v1458
        %v1460 = vrot.slane %v1450, %v1459
        %v1461 = vlaneseq
        %v1462 = vshrl.u32 %v1461, 7
        %v1463 = vsub.s32 0, %v1462
        %v1464 = vrot.slane %v1451, %v1463
        %v1465 = vlaneseq
        %v1466 = vshrl.u32 %v1465, 7
        %v1467 = vsub.s32 0, %v1466
        %v1468 = vrot.slane %v1452, %v1467
        %1469 = vrot.lane.b32.xlu0 %v1247, 111
        %v1470 = vpop.permute.xlu0 %1469
        %1471 = vrot.lane.b32.xlu0 %v1275, 111
        %v1472 = vpop.permute.xlu0 %1471
        %1473 = vrot.lane.b32.xlu0 %v1248, 111
        %v1474 = vpop.permute.xlu0 %1473
        %1475 = vrot.lane.b32.xlu0 %v1249, 111
        %v1476 = vpop.permute.xlu0 %1475
        %1477 = vrot.lane.b32.xlu0 %v1276, 111
        %v1478 = vpop.permute.xlu0 %1477
        %1479 = vrot.lane.b32.xlu0 %v1250, 111
        %v1480 = vpop.permute.xlu0 %1479
        %v1481 = vsel %vm871, %v1470, %v1472
        %v1482 = vsel %vm871, %v1472, %v1474
        %v1483 = vsel %vm871, %v1476, %v1478
        %v1484 = vsel %vm871, %v1478, %v1480
        %v1489 = vmul.f32 %v1456, %v1481
        %v1490 = vmul.f32 %v1460, %v1482
        %v1491 = vmul.f32 %v1464, %v1483
        %v1492 = vmul.f32 %v1468, %v1484
        %v1493 = vadd.f32 %v1429, %v1489
        %v1494 = vadd.f32 %v1430, %v1490
        %v1495 = vadd.f32 %v1431, %v1491
        %v1496 = vadd.f32 %v1432, %v1492
        %v1497 = vrcp.pop %v1445
        %v1498 = vmul.f32 1.0, %v1497
        %v1499 = vrcp.pop %v1446
        %v1500 = vmul.f32 1.0, %v1499
        %v1501 = vrcp.pop %v1447
        %v1502 = vmul.f32 1.0, %v1501
        %v1503 = vrcp.pop %v1448
        %v1504 = vmul.f32 1.0, %v1503
        %v1505 = vlaneseq
        %v1506 = vshrl.u32 %v1505, 7
        %v1507 = vsub.s32 0, %v1506
        %v1508 = vrot.slane %v1498, %v1507
        %v1509 = vlaneseq
        %v1510 = vshrl.u32 %v1509, 7
        %v1511 = vsub.s32 0, %v1510
        %v1512 = vrot.slane %v1500, %v1511
        %v1513 = vlaneseq
        %v1514 = vshrl.u32 %v1513, 7
        %v1515 = vsub.s32 0, %v1514
        %v1516 = vrot.slane %v1502, %v1515
        %v1517 = vlaneseq
        %v1518 = vshrl.u32 %v1517, 7
        %v1519 = vsub.s32 0, %v1518
        %v1520 = vrot.slane %v1504, %v1519
        %v1521 = vmul.f32 %v1493, %v1508
        %v1522 = vmul.f32 %v1494, %v1512
        %v1523 = vmul.f32 %v1495, %v1516
        %v1524 = vmul.f32 %v1496, %v1520
        %v1529 = vcombine.low %v1521, %v1522
        %v1530 = vcombine.low %v1523, %v1524
        %1533 = vst [vmem:[%s295] sm:$0xff] %v1529
        %1534 = vst [vmem:[%s295 + $0x8] sm:$0xff] %v1530
        %s1535 = sand.u32 %s131, 1
        %s1536 = scalar_lea.sflag [#allocation6], %s1535
        %s1537 = sand.u32 %s131, 1
        %s1538 = smul.addr %s1537, 16
        %s1539 = scalar_lea.vmem [#allocation10], %s1538
        // Predicated region
        $region49: #{tpu_custom_call.1} parent=35 // pred_check
          %p1540 = pneg %p141
        $region50: #{tpu_custom_call.1} parent=35 // pred_check_branch
          %1542 = sbr.rel (%p1540) target = $region52
        $region51: #{tpu_custom_call.1} parent=35 // pred_region
          %s1543 = smul.u32 2, %s24
          %s1545 = ssub.s32 256, 256
          %1546 = vsyncadd %s1536, %s1545
          %s1547 = smul.addr %s1543, 2
          %s1548 = smul.addr %s1547, 64
          %s1549 = scalar_lea.hbm %s4, %s1548
          %s1550 = sshll.u32 %s1539, 4
          %s1551 = int_to_ptr.vmem [resolvable:$true] %s1550
          %1556 = dma.vmem_to_hbm [thread:$0]  %s1551, 256, %s1549, %s1536, 128, 128, 8
        $region52: #{tpu_custom_call.1} parent=35 // pred_fallthru
          _
      $region36: #{tpu_custom_call.1} parent=5 // pred_fallthru
        _
      %p1557 = scmp.le.s32.totalorder 2, %s19
      // Predicated region
      $region53: #{tpu_custom_call.1} parent=5 // pred_check
        %p1558 = pneg %p1557
      $region54: #{tpu_custom_call.1} parent=5 // pred_check_branch
        %1560 = sbr.rel (%p1558) target = $region56
      $region55: #{tpu_custom_call.1} parent=5 // pred_region
        %s1561 = ssub.s32 %s19, 2
        // Predicated region
        $region57: #{tpu_custom_call.1} parent=55 // pred_check
          %p1562 = pneg %p147
        $region58: #{tpu_custom_call.1} parent=55 // pred_check_branch
          %1564 = sbr.rel (%p1562) target = $region60
        $region59: #{tpu_custom_call.1} parent=55 // pred_region
          %s1565 = sand.u32 %s132, 1
          %s1566 = scalar_lea.sflag [#allocation6], %s1565
          %s1567 = sand.u32 %s132, 1
          %s1568 = smul.addr %s1567, 16
          %s1569 = scalar_lea.vmem [#allocation10], %s1568
          %1570 = dma.done %s1566, 256
        $region60: #{tpu_custom_call.1} parent=55 // pred_fallthru
          _
      $region56: #{tpu_custom_call.1} parent=5 // pred_fallthru
        _
    $region6: #{tpu_custom_call.1} parent=1 // loop_footer
      %s23 = sadd.s32 1, %s19
    $region7: #{tpu_custom_call.1} parent=1 // loop_footer_branch
      %18 = sbr.rel target = $region3
    $region8: #{tpu_custom_call.1} parent=1 // loop_exit
      _
    %1571 = vsyncpa [#allocation5], 1
    %s1572 = scalar_lea.sflag [#allocation5], 1
    %1573 = vsyncpa %s1572, 1
    %1574 = vsyncpa [#allocation8], 1
    %s1575 = scalar_lea.sflag [#allocation8], 1
    %1576 = vsyncpa %s1575, 1
    %1577 = vsyncpa [#allocation6], 1
    %s1578 = scalar_lea.sflag [#allocation6], 1
    %1579 = vsyncpa %s1578, 1

</llo_original>
